<compile_context>
chip_gen: v7x
topology: tpu7x:2x2x1
jax: 0.10.0
libtpu: 0.0.40
codegen_flags: <defaults>
</compile_context>

<pallas_src>
import functools
from typing import NamedTuple

import numpy as np

import jax
import jax.numpy as jnp
from jax import lax
from jax.experimental import pallas as pl
from jax.experimental.pallas import tpu as pltpu

LN_EPS = 1e-5   # torch.nn.LayerNorm default
LANE = 128


def _round_up(a, b):
    return ((a + b - 1) // b) * b


def _num_row_chunks(tm):
    # Sub-tile the row block so chunk c+1's LN (XLU) / ELU exp (EUP) can be
    # scheduled under chunk c's Linear-2 matmul (MXU).
    for c in (4, 2):
        if tm % (8 * c) == 0 and tm // c >= 64:
            return c
    return 1


def _vmem_cap_bytes():
    """Per-core VMEM capacity; falls back to the v7x 64 MiB if unknown."""
    try:
        info = pltpu.get_tpu_info()
        cap = int(getattr(info, "vmem_capacity_bytes", 0) or 0)
    except Exception:
        cap = 0
    return cap if cap > 0 else 64 * 2**20


# ----------------------------------------------------------------------------
# Kernel bodies
# ----------------------------------------------------------------------------

def _embed_rows(x, w1, b1, gamma, beta, lane_mask, *, hidden_real,
                use_vpu_linear1, mxu_dtype):
    """rows -> ELU(LayerNorm(x @ w1 + b1)) in f32; padded lanes stay exactly 0."""
    if use_vpu_linear1:
        # Tiny K (module default input_dim=1): broadcast FMA on the VPU,
        # keeping the MXU free for the H x H matmul.
        h = jnp.broadcast_to(b1, (x.shape[0], w1.shape[1]))
        for k in range(x.shape[1]):          # static unroll
            h = h + x[:, k:k + 1] * w1[k:k + 1, :]
    else:
        # NOTE: LN statistics see bf16-rounded h here (documented divergence
        # from the f32 PyTorch module); accumulation is still f32.
        h = jnp.dot(x.astype(mxu_dtype), w1,
                    preferred_element_type=jnp.float32) + b1

    # Centered two-pass LayerNorm over the *real* hidden features only.
    inv_h = 1.0 / float(hidden_real)
    mean = jnp.sum(h, axis=-1, keepdims=True) * inv_h   # padded lanes of h are 0
    d = h - mean
    if lane_mask is not None:
        d = jnp.where(lane_mask, d, 0.0)                # re-zero padded lanes
    var = jnp.sum(d * d, axis=-1, keepdims=True) * inv_h
    hn = d * lax.rsqrt(var + LN_EPS) * gamma + beta     # gamma/beta padding = 0

    # Dropout(p=0.1): identity in eval mode.
    # TODO(synk): training-mode dropout mask via pltpu.prng_random_bits.

    # ELU(alpha=1); clamp the exp input so large positives never produce inf.
    t = jnp.exp(jnp.minimum(hn, 0.0))
    em1 = jnp.where(t == 1.0, hn, t - 1.0)              # compensated exp(x)-1
    return jnp.where(hn > 0, hn, em1)                   # stays 0 in padded lanes


def _kernel_resident_w2(x_ref, w1_ref, w2_ref, vec_ref, o_ref, *,
                        hidden_real, use_vpu_linear1, mxu_dtype, row_chunks):
    # x_ref: (TM, K)  w1_ref: (K, Hp)  w2_ref: (Hp, Hp)
    # vec_ref: (4, Hp) rows = [b1, gamma, beta, b2]  o_ref: (TM, Hp block)
    vec = vec_ref[...].astype(jnp.float32)
    b1, gamma, beta, b2 = vec[0:1, :], vec[1:2, :], vec[2:3, :], vec[3:4, :]
    hp = vec.shape[1]
    lane_mask = None
    if hp != hidden_real:
        lane_mask = lax.broadcasted_iota(jnp.int32, (1, hp), 1) < hidden_real
    w1 = w1_ref[...]
    if use_vpu_linear1:
        w1 = w1.astype(jnp.float32)
    w2 = w2_ref[...]
    x = x_ref[...].astype(jnp.float32)

    chunk = x.shape[0] // row_chunks
    for c in range(row_chunks):              # static unroll, single basic block
        r0, r1 = c * chunk, (c + 1) * chunk
        e = _embed_rows(x[r0:r1, :], w1, b1, gamma, beta, lane_mask,
                        hidden_real=hidden_real,
                        use_vpu_linear1=use_vpu_linear1, mxu_dtype=mxu_dtype)
        y = jnp.dot(e.astype(mxu_dtype), w2,
                    preferred_element_type=jnp.float32) + b2
        o_ref[r0:r1, :] = y.astype(o_ref.dtype)


def _kernel_col_tiled(x_ref, w1_ref, w2_ref, vec_ref, vecj_ref, o_ref, e_ref, *,
                      hidden_real, use_vpu_linear1, mxu_dtype, row_chunks):
    # grid = (row blocks 'parallel', w2 column blocks 'arbitrary').
    # x_ref: (TM, K)  w1_ref: (K, Hp)  w2_ref: (Hp, TN)  vec_ref: (4, Hp)
    # vecj_ref: (4, TN) column slice (row 3 = b2 slice)  o_ref: (TM, TN)
    # e_ref: (TM, Hp) scratch holding ELU(LN(Linear1)), reused across columns.
    j = pl.program_id(1)

    @pl.when(j == 0)
    def _():
        vec = vec_ref[...].astype(jnp.float32)
        b1, gamma, beta = vec[0:1, :], vec[1:2, :], vec[2:3, :]
        hp = vec.shape[1]
        lane_mask = None
        if hp != hidden_real:
            lane_mask = lax.broadcasted_iota(jnp.int32, (1, hp), 1) < hidden_real
        w1 = w1_ref[...]
        if use_vpu_linear1:
            w1 = w1.astype(jnp.float32)
        x = x_ref[...].astype(jnp.float32)
        chunk = x.shape[0] // row_chunks
        for c in range(row_chunks):
            r0, r1 = c * chunk, (c + 1) * chunk
            e = _embed_rows(x[r0:r1, :], w1, b1, gamma, beta, lane_mask,
                            hidden_real=hidden_real,
                            use_vpu_linear1=use_vpu_linear1,
                            mxu_dtype=mxu_dtype)
            e_ref[r0:r1, :] = e.astype(e_ref.dtype)

    b2 = vecj_ref[3:4, :].astype(jnp.float32)
    y = jnp.dot(e_ref[...], w2_ref[...],
                preferred_element_type=jnp.float32) + b2
    o_ref[...] = y.astype(o_ref.dtype)


# ----------------------------------------------------------------------------
# Host-side wrapper
# ----------------------------------------------------------------------------

class PreparedParams(NamedTuple):
    w1: jax.Array          # (input_dim, hidden_pad); f32 (VPU path) or mxu dtype
    w2: jax.Array          # (hidden_pad, hidden_pad), mxu dtype
    vec: jax.Array         # (4, hidden_pad) f32 rows: [b1, gamma, beta, b2]
    hidden: int
    input_dim: int
    use_vpu_linear1: bool


def prepare_params(params, *, mxu_dtype=jnp.bfloat16):
    """Pad / cast the weights once (hoist out of the hot path and reuse)."""
    w1, b1, gamma, beta, w2, b2 = params
    input_dim, hidden = w1.shape
    hidden_pad = _round_up(hidden, LANE)
    pad = hidden_pad - hidden
    use_vpu_linear1 = input_dim <= 8
    w1 = w1.astype(jnp.float32 if use_vpu_linear1 else mxu_dtype)
    w2 = w2.astype(mxu_dtype)
    vec = jnp.stack([b1, gamma, beta, b2]).astype(jnp.float32)
    if pad:  # zero padding is load-bearing for the in-kernel LayerNorm
        w1 = jnp.pad(w1, ((0, 0), (0, pad)))
        w2 = jnp.pad(w2, ((0, pad), (0, pad)))
        vec = jnp.pad(vec, ((0, 0), (0, pad)))
    return PreparedParams(w1, w2, vec, int(hidden), int(input_dim),
                          use_vpu_linear1)


def progression_embeddings(x, params, *, out_dtype=jnp.bfloat16, tile_rows=None,
                           mxu_dtype=jnp.bfloat16, col_tile=None,
                           force_col_tiling=False, max_resident_w2_bytes=None,
                           single_buffer_weights=True):
    """Fused eval-mode forward: x (..., input_dim) -> (..., hidden_dim).

    `params` is either the raw tuple (w1, b1, gamma, beta, w2, b2) or a
    PreparedParams from prepare_params() (prepare once, reuse across calls).
    """
    prepared = (params if isinstance(params, PreparedParams)
                else prepare_params(params, mxu_dtype=mxu_dtype))
    w1_p, w2_p, vec = prepared.w1, prepared.w2, prepared.vec
    hidden, input_dim = prepared.hidden, prepared.input_dim
    use_vpu_linear1 = prepared.use_vpu_linear1
    mxu_dtype = w2_p.dtype
    hidden_pad = w2_p.shape[1]

    assert x.shape[-1] == input_dim
    out_dtype = np.dtype(x.dtype) if out_dtype is None else np.dtype(out_dtype)
    leading = x.shape[:-1]
    x2 = x.reshape(-1, input_dim).astype(jnp.float32)   # free collapse for f32 x
    n = x2.shape[0]

    cap = _vmem_cap_bytes()

    # Row tile: big tiles amortize per-step overhead; keep >= 2 row blocks so
    # both v7x TensorCores get work under dimension_semantics=("parallel", ...).
    if tile_rows is None:
        tile_rows = 512 if cap >= 96 * 2**20 else 256   # v5e/v6e vs v7x
    tm = _round_up(int(tile_rows), 8)
    if n <= tm:
        tm = max(8, _round_up(pl.cdiv(n, 2), 8))
    row_chunks = _num_row_chunks(tm)
    n_rows = pl.cdiv(n, tm)

    # w2 column tiling when a resident (Hp, Hp) w2 would crowd per-core VMEM.
    if max_resident_w2_bytes is None:
        max_resident_w2_bytes = int(0.4 * cap)
    col_tiled = bool(force_col_tiling) or (w2_p.nbytes > max_resident_w2_bytes)
    n_cols = 1
    if col_tiled:
        if col_tile is None:
            col_tile = next(t for t in (1024, 512, 256, 128)
                            if t <= hidden_pad and hidden_pad % t == 0)
        col_tile = int(col_tile)
        assert hidden_pad % col_tile == 0 and col_tile % LANE == 0
        n_cols = hidden_pad // col_tile

    # VMEM budget estimate used to size vmem_limit_bytes.
    out_isize = out_dtype.itemsize
    if col_tiled:
        resident = w1_p.nbytes + vec.nbytes
        streamed = (tm * input_dim * 4
                    + hidden_pad * col_tile * w2_p.dtype.itemsize
                    + 4 * col_tile * 4 + tm * col_tile * out_isize)
        scratch_bytes = tm * hidden_pad * np.dtype(mxu_dtype).itemsize
    else:
        resident = w1_p.nbytes + w2_p.nbytes + vec.nbytes
        streamed = tm * input_dim * 4 + tm * hidden_pad * out_isize
        scratch_bytes = 0
    interm = 8 * tm * hidden_pad * 4        # generous f32 temporaries headroom

    kernel_kwargs = dict(hidden_real=hidden, use_vpu_linear1=use_vpu_linear1,
                         mxu_dtype=mxu_dtype, row_chunks=row_chunks)

    def run(single_buffer, lane_exact_out):
        wbuf = 1 if single_buffer else 2
        limit = int(min(0.85 * cap,
                        max(2 * (wbuf * resident + 2 * streamed
                                 + scratch_bytes + interm), 32 * 2**20)))

        def rspec(shape, index_map):
            # Resident operands (constant index map): single buffer if allowed.
            if single_buffer:
                return pl.BlockSpec(shape, index_map,
                                    pipeline_mode=pl.Buffered(1))
            return pl.BlockSpec(shape, index_map)

        out_cols = hidden if lane_exact_out else hidden_pad
        out_shape = jax.ShapeDtypeStruct((n, out_cols), out_dtype)

        if col_tiled:
            cp = pltpu.CompilerParams(
                dimension_semantics=("parallel", "arbitrary"),
                vmem_limit_bytes=limit)
            kernel = functools.partial(_kernel_col_tiled, **kernel_kwargs)
            out = pl.pallas_call(
                kernel, out_shape=out_shape, grid=(n_rows, n_cols),
                in_specs=[
                    pl.BlockSpec((tm, input_dim), lambda i, j: (i, 0)),
                    rspec((input_dim, hidden_pad), lambda i, j: (0, 0)),
                    pl.BlockSpec((hidden_pad, col_tile), lambda i, j: (0, j)),
                    rspec((4, hidden_pad), lambda i, j: (0, 0)),
                    pl.BlockSpec((4, col_tile), lambda i, j: (0, j)),
                ],
                out_specs=pl.BlockSpec((tm, col_tile), lambda i, j: (i, j)),
                scratch_shapes=[pltpu.VMEM((tm, hidden_pad), mxu_dtype)],
                compiler_params=cp,
            )(x2, w1_p, w2_p, vec, vec)
        else:
            cp = pltpu.CompilerParams(
                dimension_semantics=("parallel",),
                vmem_limit_bytes=limit)
            kernel = functools.partial(_kernel_resident_w2, **kernel_kwargs)
            out = pl.pallas_call(
                kernel, out_shape=out_shape, grid=(n_rows,),
                in_specs=[
                    pl.BlockSpec((tm, input_dim), lambda i: (i, 0)),
                    rspec((input_dim, hidden_pad), lambda i: (0, 0)),
                    rspec((hidden_pad, hidden_pad), lambda i: (0, 0)),
                    rspec((4, hidden_pad), lambda i: (0, 0)),
                ],
                out_specs=pl.BlockSpec((tm, hidden_pad), lambda i: (i, 0)),
                compiler_params=cp,
            )(x2, w1_p, w2_p, vec)

        if out.shape[1] != hidden:
            out = out[:, :hidden]
        return out

    # Attempt ladder: single-buffered weights + unpadded output first, then
    # fall back if this runtime rejects either feature (correctness identical).
    attempts = ([(True, True)] if single_buffer_weights else []) \
        + [(False, True), (False, False)]
    out, last_err = None, None
    for sb, exact in attempts:
        try:
            out = run(sb, exact)
            break
        except Exception as err:      # fall back to the next configuration
            last_err = err
    if out is None:
        raise last_err

    return out.reshape(*leading, hidden)


# ----------------------------------------------------------------------------
# Synthetic init + self-test
# ----------------------------------------------------------------------------

def init_params(key, input_dim, hidden_dim):
    """Deterministic synthetic parameter init (matches module shapes)."""
    k1, k2, k3, k4 = jax.random.split(key, 4)
    bound1 = 1.0 / jnp.sqrt(input_dim)
    w1 = jax.random.uniform(k1, (input_dim, hidden_dim), jnp.float32,
                            -bound1, bound1)
    b1 = jax.random.uniform(k2, (hidden_dim,), jnp.float32, -bound1, bound1)
    gamma = jnp.ones((hidden_dim,), jnp.float32)
    beta = jnp.zeros((hidden_dim,), jnp.float32)
    bound2 = 1.0 / jnp.sqrt(hidden_dim)
    w2 = jax.random.uniform(k3, (hidden_dim, hidden_dim), jnp.float32,
                            -bound2, bound2)
    b2 = jax.random.uniform(k4, (hidden_dim,), jnp.float32, -bound2, bound2)
    return (w1, b1, gamma, beta, w2, b2)


def _reference(x, params, mxu_dtype=jnp.bfloat16):
    """Pure-JAX reference mirroring the kernel's MXU bf16 feed (f32 elsewhere)."""
    w1, b1, gamma, beta, w2, b2 = params
    input_dim, hidden = w1.shape
    xf = x.reshape(-1, input_dim).astype(jnp.float32)
    if input_dim <= 8:
        h = xf @ w1 + b1
    else:
        h = (xf.astype(mxu_dtype).astype(jnp.float32)
             @ w1.astype(mxu_dtype).astype(jnp.float32)) + b1
    mu = h.mean(-1, keepdims=True)
    var = ((h - mu) ** 2).mean(-1, keepdims=True)
    hn = (h - mu) / jnp.sqrt(var + LN_EPS) * gamma + beta
    e = jnp.where(hn > 0, hn, jnp.expm1(hn))
    e = e.astype(mxu_dtype).astype(jnp.float32)
    w2f = w2.astype(mxu_dtype).astype(jnp.float32)
    y = e @ w2f + b2
    return y.reshape(*x.shape[:-1], hidden)


if __name__ == "__main__":
    key = jax.random.PRNGKey(0)

    # ---- test 1: module defaults (input_dim=1), resident-w2 path -----------
    batch, seq, input_dim, hidden = 2, 8, 1, 32
    kx, kp, key = jax.random.split(key, 3)
    x = jax.random.normal(kx, (batch, seq, input_dim), jnp.float32)
    params = init_params(kp, input_dim, hidden)
    prepared = prepare_params(params)        # prep once, reuse across calls
    y = progression_embeddings(x, prepared)
    jax.block_until_ready(y)
    assert y.shape == (batch, seq, hidden)
    y32 = y.astype(jnp.float32)
    assert bool(jnp.all(jnp.isfinite(y32)))
    ref = _reference(x, params)
    assert jnp.allclose(y32, ref, atol=2e-2, rtol=2e-2)

    # ---- test 2: MXU Linear-1 path + forced w2 column tiling ---------------
    batch, seq, input_dim, hidden = 2, 8, 16, 256
    kx, kp, key = jax.random.split(key, 3)
    x = jax.random.normal(kx, (batch, seq, input_dim), jnp.float32)
    params = init_params(kp, input_dim, hidden)
    prepared = prepare_params(params)
    y = progression_embeddings(x, prepared, force_col_tiling=True, col_tile=128)
    jax.block_until_ready(y)
    assert y.shape == (batch, seq, hidden)
    y32 = y.astype(jnp.float32)
    assert bool(jnp.all(jnp.isfinite(y32)))
    ref = _reference(x, params)
    assert jnp.allclose(y32, ref, atol=2e-2, rtol=2e-2)

    print("KERNEL_OK")
</pallas_src>

<mosaic_0001>
module attributes {stable_mosaic.version = 11 : i64} {
  func.func @_kernel_resident_w2(%arg0: i32, %arg1: memref<8x1xf32, #tpu.memory_space<vmem>>, %arg2: memref<1x128xf32, #tpu.memory_space<vmem>>, %arg3: memref<128x128xbf16, #tpu.memory_space<vmem>>, %arg4: memref<4x128xf32, #tpu.memory_space<vmem>>, %arg5: memref<8x128xbf16, #tpu.memory_space<vmem>>) attributes {dimension_semantics = [#tpu.dimension_semantics<parallel>], iteration_bounds = array<i64: 2>, scalar_prefetch = 0 : i64, scratch_operands = 0 : i64, tpu.core_type = #tpu.core_type<tc>, window_params = [{transform_indices = @transform_0, window_bounds = array<i64: 8, 1>}, {pipeline_mode = #tpu.pipeline_mode<synchronous>, transform_indices = @transform_1, window_bounds = array<i64: 1, 128>}, {pipeline_mode = #tpu.pipeline_mode<synchronous>, transform_indices = @transform_2, window_bounds = array<i64: 128, 128>}, {pipeline_mode = #tpu.pipeline_mode<synchronous>, transform_indices = @transform_3, window_bounds = array<i64: 4, 128>}, {transform_indices = @transform_4, window_bounds = array<i64: 8, 128>}]} {
    %c0 = arith.constant 0 : index
    %c0_0 = arith.constant 0 : index
    %0 = vector.load %arg4[%c0, %c0_0] : memref<4x128xf32, #tpu.memory_space<vmem>>, vector<4x128xf32>
    %1 = vector.extract_strided_slice %0 {offsets = [0, 0], sizes = [1, 128], strides = [1, 1]} : vector<4x128xf32> to vector<1x128xf32>
    %2 = vector.extract_strided_slice %0 {offsets = [1, 0], sizes = [1, 128], strides = [1, 1]} : vector<4x128xf32> to vector<1x128xf32>
    %3 = vector.extract_strided_slice %0 {offsets = [2, 0], sizes = [1, 128], strides = [1, 1]} : vector<4x128xf32> to vector<1x128xf32>
    %4 = vector.extract_strided_slice %0 {offsets = [3, 0], sizes = [1, 128], strides = [1, 1]} : vector<4x128xf32> to vector<1x128xf32>
    %5 = tpu.iota {dimensions = array<i32: 1>} : vector<1x128xi32>
    %c32_i32 = arith.constant 32 : i32
    %6 = vector.broadcast %c32_i32 : i32 to vector<1x128xi32>
    %7 = arith.cmpi slt, %5, %6 : vector<1x128xi32>
    %c0_1 = arith.constant 0 : index
    %c0_2 = arith.constant 0 : index
    %8 = vector.load %arg2[%c0_1, %c0_2] : memref<1x128xf32, #tpu.memory_space<vmem>>, vector<1x128xf32>
    %c0_3 = arith.constant 0 : index
    %c0_4 = arith.constant 0 : index
    %9 = vector.load %arg3[%c0_3, %c0_4] : memref<128x128xbf16, #tpu.memory_space<vmem>>, vector<128x128xbf16>
    %c0_5 = arith.constant 0 : index
    %c0_6 = arith.constant 0 : index
    %10 = vector.load %arg1[%c0_5, %c0_6] : memref<8x1xf32, #tpu.memory_space<vmem>>, vector<8x1xf32>
    %11 = vector.shape_cast %1 : vector<1x128xf32> to vector<1x128xf32>
    %12 = vector.broadcast %11 : vector<1x128xf32> to vector<8x128xf32>
    %13 = vector.broadcast %10 : vector<8x1xf32> to vector<8x128xf32>
    %14 = vector.broadcast %8 : vector<1x128xf32> to vector<8x128xf32>
    %15 = arith.mulf %13, %14 : vector<8x128xf32>
    %16 = arith.addf %12, %15 : vector<8x128xf32>
    %cst = arith.constant dense<0.000000e+00> : vector<8xf32>
    %17 = vector.multi_reduction <add>, %16, %cst [1] : vector<8x128xf32> to vector<8xf32>
    %18 = vector.shape_cast %17 : vector<8xf32> to vector<8x1xf32>
    %cst_7 = arith.constant 3.125000e-02 : f32
    %19 = vector.broadcast %cst_7 : f32 to vector<8x1xf32>
    %20 = arith.mulf %18, %19 : vector<8x1xf32>
    %21 = vector.broadcast %20 : vector<8x1xf32> to vector<8x128xf32>
    %22 = arith.subf %16, %21 : vector<8x128xf32>
    %cst_8 = arith.constant 0.000000e+00 : f32
    %23 = vector.shape_cast %7 : vector<1x128xi1> to vector<1x128xi1>
    %24 = vector.broadcast %23 : vector<1x128xi1> to vector<8x128xi1>
    %25 = vector.broadcast %cst_8 : f32 to vector<8x128xf32>
    %26 = arith.select %24, %22, %25 : vector<8x128xi1>, vector<8x128xf32>
    %27 = arith.mulf %26, %26 : vector<8x128xf32>
    %cst_9 = arith.constant dense<0.000000e+00> : vector<8xf32>
    %28 = vector.multi_reduction <add>, %27, %cst_9 [1] : vector<8x128xf32> to vector<8xf32>
    %29 = vector.shape_cast %28 : vector<8xf32> to vector<8x1xf32>
    %cst_10 = arith.constant 3.125000e-02 : f32
    %30 = vector.broadcast %cst_10 : f32 to vector<8x1xf32>
    %31 = arith.mulf %29, %30 : vector<8x1xf32>
    %cst_11 = arith.constant 9.99999974E-6 : f32
    %32 = vector.broadcast %cst_11 : f32 to vector<8x1xf32>
    %33 = arith.addf %31, %32 : vector<8x1xf32>
    %34 = math.rsqrt %33 : vector<8x1xf32>
    %35 = vector.broadcast %34 : vector<8x1xf32> to vector<8x128xf32>
    %36 = arith.mulf %26, %35 : vector<8x128xf32>
    %37 = vector.broadcast %2 : vector<1x128xf32> to vector<8x128xf32>
    %38 = arith.mulf %36, %37 : vector<8x128xf32>
    %39 = vector.broadcast %3 : vector<1x128xf32> to vector<8x128xf32>
    %40 = arith.addf %38, %39 : vector<8x128xf32>
    %cst_12 = arith.constant 0.000000e+00 : f32
    %41 = vector.broadcast %cst_12 : f32 to vector<8x128xf32>
    %42 = arith.minimumf %40, %41 : vector<8x128xf32>
    %43 = math.exp %42 : vector<8x128xf32>
    %cst_13 = arith.constant 1.000000e+00 : f32
    %44 = vector.broadcast %cst_13 : f32 to vector<8x128xf32>
    %45 = arith.cmpf oeq, %43, %44 : vector<8x128xf32>
    %cst_14 = arith.constant 1.000000e+00 : f32
    %46 = vector.broadcast %cst_14 : f32 to vector<8x128xf32>
    %47 = arith.subf %43, %46 : vector<8x128xf32>
    %48 = arith.select %45, %40, %47 : vector<8x128xi1>, vector<8x128xf32>
    %cst_15 = arith.constant 0.000000e+00 : f32
    %49 = vector.broadcast %cst_15 : f32 to vector<8x128xf32>
    %50 = arith.cmpf ogt, %40, %49 : vector<8x128xf32>
    %51 = arith.select %50, %40, %48 : vector<8x128xi1>, vector<8x128xf32>
    %52 = arith.truncf %51 : vector<8x128xf32> to vector<8x128xbf16>
    %cst_16 = arith.constant dense<0.000000e+00> : vector<8x128xf32>
    %53 = tpu.matmul %52, %9, %cst_16 {dimension_numbers = #tpu.dot_dimension_numbers<[1], [0], [0], [1], [0, 0, 1, 1], [], []>} : vector<8x128xbf16>, vector<128x128xbf16>, vector<8x128xf32> -> vector<8x128xf32>
    %54 = vector.broadcast %4 : vector<1x128xf32> to vector<8x128xf32>
    %55 = arith.addf %53, %54 : vector<8x128xf32>
    %56 = arith.truncf %55 : vector<8x128xf32> to vector<8x128xbf16>
    %c0_17 = arith.constant 0 : index
    %c0_18 = arith.constant 0 : index
    %57 = vector.load %arg5[%c0_17, %c0_18] : memref<8x128xbf16, #tpu.memory_space<vmem>>, vector<8x128xbf16>
    tpu.vector_store %arg5[%c0_17, %c0_18], %56 {strides = array<i32>} : memref<8x128xbf16, #tpu.memory_space<vmem>>, vector<8x128xbf16>,
    return
  }
  func.func @transform_0(%arg0: i32) -> (i32, i32) {
    %c0_i32 = arith.constant 0 : i32
    %c0_i32_0 = arith.constant 0 : i32
    return %arg0, %c0_i32 : i32, i32
  }
  func.func @transform_1(%arg0: i32) -> (i32, i32) {
    %c0_i32 = arith.constant 0 : i32
    %c0_i32_0 = arith.constant 0 : i32
    %c0_i32_1 = arith.constant 0 : i32
    return %c0_i32, %c0_i32_0 : i32, i32
  }
  func.func @transform_2(%arg0: i32) -> (i32, i32) {
    %c0_i32 = arith.constant 0 : i32
    %c0_i32_0 = arith.constant 0 : i32
    %c0_i32_1 = arith.constant 0 : i32
    return %c0_i32, %c0_i32_0 : i32, i32
  }
  func.func @transform_3(%arg0: i32) -> (i32, i32) {
    %c0_i32 = arith.constant 0 : i32
    %c0_i32_0 = arith.constant 0 : i32
    %c0_i32_1 = arith.constant 0 : i32
    return %c0_i32, %c0_i32_0 : i32, i32
  }
  func.func @transform_4(%arg0: i32) -> (i32, i32) {
    %c0_i32 = arith.constant 0 : i32
    %c0_i32_0 = arith.constant 0 : i32
    return %arg0, %c0_i32 : i32, i32
  }
}

module attributes {stable_mosaic.version = 11 : i64} {
  func.func @_kernel_resident_w2(%arg0: i32, %arg1: memref<8x1xf32, #tpu.memory_space<vmem>>, %arg2: memref<1x128xf32, #tpu.memory_space<vmem>>, %arg3: memref<128x128xbf16, #tpu.memory_space<vmem>>, %arg4: memref<4x128xf32, #tpu.memory_space<vmem>>, %arg5: memref<8x128xbf16, #tpu.memory_space<vmem>>) attributes {dimension_semantics = [#tpu.dimension_semantics<parallel>], iteration_bounds = array<i64: 2>, scalar_prefetch = 0 : i64, scratch_operands = 0 : i64, tpu.core_type = #tpu.core_type<tc>, window_params = [{transform_indices = @transform_0, window_bounds = array<i64: 8, 1>}, {pipeline_mode = #tpu.pipeline_mode<synchronous>, transform_indices = @transform_1, window_bounds = array<i64: 1, 128>}, {pipeline_mode = #tpu.pipeline_mode<synchronous>, transform_indices = @transform_2, window_bounds = array<i64: 128, 128>}, {pipeline_mode = #tpu.pipeline_mode<synchronous>, transform_indices = @transform_3, window_bounds = array<i64: 4, 128>}, {transform_indices = @transform_4, window_bounds = array<i64: 8, 128>}]} {
    %c0 = arith.constant 0 : index
    %c0_0 = arith.constant 0 : index
    %0 = vector.load %arg4[%c0, %c0_0] : memref<4x128xf32, #tpu.memory_space<vmem>>, vector<4x128xf32>
    %1 = vector.extract_strided_slice %0 {offsets = [0, 0], sizes = [1, 128], strides = [1, 1]} : vector<4x128xf32> to vector<1x128xf32>
    %2 = vector.extract_strided_slice %0 {offsets = [1, 0], sizes = [1, 128], strides = [1, 1]} : vector<4x128xf32> to vector<1x128xf32>
    %3 = vector.extract_strided_slice %0 {offsets = [2, 0], sizes = [1, 128], strides = [1, 1]} : vector<4x128xf32> to vector<1x128xf32>
    %4 = vector.extract_strided_slice %0 {offsets = [3, 0], sizes = [1, 128], strides = [1, 1]} : vector<4x128xf32> to vector<1x128xf32>
    %5 = tpu.iota {dimensions = array<i32: 1>} : vector<1x128xi32>
    %c32_i32 = arith.constant 32 : i32
    %6 = vector.broadcast %c32_i32 : i32 to vector<1x128xi32>
    %7 = arith.cmpi slt, %5, %6 : vector<1x128xi32>
    %c0_1 = arith.constant 0 : index
    %c0_2 = arith.constant 0 : index
    %8 = vector.load %arg2[%c0_1, %c0_2] : memref<1x128xf32, #tpu.memory_space<vmem>>, vector<1x128xf32>
    %c0_3 = arith.constant 0 : index
    %c0_4 = arith.constant 0 : index
    %9 = vector.load %arg3[%c0_3, %c0_4] : memref<128x128xbf16, #tpu.memory_space<vmem>>, vector<128x128xbf16>
    %c0_5 = arith.constant 0 : index
    %c0_6 = arith.constant 0 : index
    %10 = vector.load %arg1[%c0_5, %c0_6] : memref<8x1xf32, #tpu.memory_space<vmem>>, vector<8x1xf32>
    %11 = vector.shape_cast %1 : vector<1x128xf32> to vector<1x128xf32>
    %12 = vector.broadcast %11 : vector<1x128xf32> to vector<8x128xf32>
    %13 = vector.broadcast %10 : vector<8x1xf32> to vector<8x128xf32>
    %14 = vector.broadcast %8 : vector<1x128xf32> to vector<8x128xf32>
    %15 = arith.mulf %13, %14 : vector<8x128xf32>
    %16 = arith.addf %12, %15 : vector<8x128xf32>
    %cst = arith.constant dense<0.000000e+00> : vector<8xf32>
    %17 = vector.multi_reduction <add>, %16, %cst [1] : vector<8x128xf32> to vector<8xf32>
    %18 = vector.shape_cast %17 : vector<8xf32> to vector<8x1xf32>
    %cst_7 = arith.constant 3.125000e-02 : f32
    %19 = vector.broadcast %cst_7 : f32 to vector<8x1xf32>
    %20 = arith.mulf %18, %19 : vector<8x1xf32>
    %21 = vector.broadcast %20 : vector<8x1xf32> to vector<8x128xf32>
    %22 = arith.subf %16, %21 : vector<8x128xf32>
    %cst_8 = arith.constant 0.000000e+00 : f32
    %23 = vector.shape_cast %7 : vector<1x128xi1> to vector<1x128xi1>
    %24 = vector.broadcast %23 : vector<1x128xi1> to vector<8x128xi1>
    %25 = vector.broadcast %cst_8 : f32 to vector<8x128xf32>
    %26 = arith.select %24, %22, %25 : vector<8x128xi1>, vector<8x128xf32>
    %27 = arith.mulf %26, %26 : vector<8x128xf32>
    %cst_9 = arith.constant dense<0.000000e+00> : vector<8xf32>
    %28 = vector.multi_reduction <add>, %27, %cst_9 [1] : vector<8x128xf32> to vector<8xf32>
    %29 = vector.shape_cast %28 : vector<8xf32> to vector<8x1xf32>
    %cst_10 = arith.constant 3.125000e-02 : f32
    %30 = vector.broadcast %cst_10 : f32 to vector<8x1xf32>
    %31 = arith.mulf %29, %30 : vector<8x1xf32>
    %cst_11 = arith.constant 9.99999974E-6 : f32
    %32 = vector.broadcast %cst_11 : f32 to vector<8x1xf32>
    %33 = arith.addf %31, %32 : vector<8x1xf32>
    %34 = math.rsqrt %33 : vector<8x1xf32>
    %35 = vector.broadcast %34 : vector<8x1xf32> to vector<8x128xf32>
    %36 = arith.mulf %26, %35 : vector<8x128xf32>
    %37 = vector.broadcast %2 : vector<1x128xf32> to vector<8x128xf32>
    %38 = arith.mulf %36, %37 : vector<8x128xf32>
    %39 = vector.broadcast %3 : vector<1x128xf32> to vector<8x128xf32>
    %40 = arith.addf %38, %39 : vector<8x128xf32>
    %cst_12 = arith.constant 0.000000e+00 : f32
    %41 = vector.broadcast %cst_12 : f32 to vector<8x128xf32>
    %42 = arith.minimumf %40, %41 : vector<8x128xf32>
    %43 = math.exp %42 : vector<8x128xf32>
    %cst_13 = arith.constant 1.000000e+00 : f32
    %44 = vector.broadcast %cst_13 : f32 to vector<8x128xf32>
    %45 = arith.cmpf oeq, %43, %44 : vector<8x128xf32>
    %cst_14 = arith.constant 1.000000e+00 : f32
    %46 = vector.broadcast %cst_14 : f32 to vector<8x128xf32>
    %47 = arith.subf %43, %46 : vector<8x128xf32>
    %48 = arith.select %45, %40, %47 : vector<8x128xi1>, vector<8x128xf32>
    %cst_15 = arith.constant 0.000000e+00 : f32
    %49 = vector.broadcast %cst_15 : f32 to vector<8x128xf32>
    %50 = arith.cmpf ogt, %40, %49 : vector<8x128xf32>
    %51 = arith.select %50, %40, %48 : vector<8x128xi1>, vector<8x128xf32>
    %52 = arith.truncf %51 : vector<8x128xf32> to vector<8x128xbf16>
    %cst_16 = arith.constant dense<0.000000e+00> : vector<8x128xf32>
    %53 = tpu.matmul %52, %9, %cst_16 {dimension_numbers = #tpu.dot_dimension_numbers<[1], [0], [0], [1], [0, 0, 1, 1], [], []>} : vector<8x128xbf16>, vector<128x128xbf16>, vector<8x128xf32> -> vector<8x128xf32>
    %54 = vector.broadcast %4 : vector<1x128xf32> to vector<8x128xf32>
    %55 = arith.addf %53, %54 : vector<8x128xf32>
    %56 = arith.truncf %55 : vector<8x128xf32> to vector<8x128xbf16>
    %c0_17 = arith.constant 0 : index
    %c0_18 = arith.constant 0 : index
    %57 = vector.load %arg5[%c0_17, %c0_18] : memref<8x128xbf16, #tpu.memory_space<vmem>>, vector<8x128xbf16>
    tpu.vector_store %arg5[%c0_17, %c0_18], %56 {strides = array<i32>} : memref<8x128xbf16, #tpu.memory_space<vmem>>, vector<8x128xbf16>,
    return
  }
  func.func @transform_0(%arg0: i32) -> (i32, i32) {
    %c0_i32 = arith.constant 0 : i32
    %c0_i32_0 = arith.constant 0 : i32
    return %arg0, %c0_i32 : i32, i32
  }
  func.func @transform_1(%arg0: i32) -> (i32, i32) {
    %c0_i32 = arith.constant 0 : i32
    %c0_i32_0 = arith.constant 0 : i32
    %c0_i32_1 = arith.constant 0 : i32
    return %c0_i32, %c0_i32_0 : i32, i32
  }
  func.func @transform_2(%arg0: i32) -> (i32, i32) {
    %c0_i32 = arith.constant 0 : i32
    %c0_i32_0 = arith.constant 0 : i32
    %c0_i32_1 = arith.constant 0 : i32
    return %c0_i32, %c0_i32_0 : i32, i32
  }
  func.func @transform_3(%arg0: i32) -> (i32, i32) {
    %c0_i32 = arith.constant 0 : i32
    %c0_i32_0 = arith.constant 0 : i32
    %c0_i32_1 = arith.constant 0 : i32
    return %c0_i32, %c0_i32_0 : i32, i32
  }
  func.func @transform_4(%arg0: i32) -> (i32, i32) {
    %c0_i32 = arith.constant 0 : i32
    %c0_i32_0 = arith.constant 0 : i32
    return %arg0, %c0_i32 : i32, i32
  }
}

module attributes {stable_mosaic.version = 11 : i64} {
  func.func @_kernel_resident_w2(%arg0: i32, %arg1: memref<8x1xf32, #tpu.memory_space<vmem>>, %arg2: memref<1x128xf32, #tpu.memory_space<vmem>>, %arg3: memref<128x128xbf16, #tpu.memory_space<vmem>>, %arg4: memref<4x128xf32, #tpu.memory_space<vmem>>, %arg5: memref<8x128xbf16, #tpu.memory_space<vmem>>) attributes {dimension_semantics = [#tpu.dimension_semantics<parallel>], iteration_bounds = array<i64: 2>, scalar_prefetch = 0 : i64, scratch_operands = 0 : i64, tpu.core_type = #tpu.core_type<tc>, window_params = [{transform_indices = @transform_0, window_bounds = array<i64: 8, 1>}, {pipeline_mode = #tpu.pipeline_mode<synchronous>, transform_indices = @transform_1, window_bounds = array<i64: 1, 128>}, {pipeline_mode = #tpu.pipeline_mode<synchronous>, transform_indices = @transform_2, window_bounds = array<i64: 128, 128>}, {pipeline_mode = #tpu.pipeline_mode<synchronous>, transform_indices = @transform_3, window_bounds = array<i64: 4, 128>}, {transform_indices = @transform_4, window_bounds = array<i64: 8, 128>}]} {
    %c0 = arith.constant 0 : index
    %c0_0 = arith.constant 0 : index
    %0 = vector.load %arg4[%c0, %c0_0] : memref<4x128xf32, #tpu.memory_space<vmem>>, vector<4x128xf32>
    %1 = vector.extract_strided_slice %0 {offsets = [0, 0], sizes = [1, 128], strides = [1, 1]} : vector<4x128xf32> to vector<1x128xf32>
    %2 = vector.extract_strided_slice %0 {offsets = [1, 0], sizes = [1, 128], strides = [1, 1]} : vector<4x128xf32> to vector<1x128xf32>
    %3 = vector.extract_strided_slice %0 {offsets = [2, 0], sizes = [1, 128], strides = [1, 1]} : vector<4x128xf32> to vector<1x128xf32>
    %4 = vector.extract_strided_slice %0 {offsets = [3, 0], sizes = [1, 128], strides = [1, 1]} : vector<4x128xf32> to vector<1x128xf32>
    %5 = tpu.iota {dimensions = array<i32: 1>} : vector<1x128xi32>
    %c32_i32 = arith.constant 32 : i32
    %6 = vector.broadcast %c32_i32 : i32 to vector<1x128xi32>
    %7 = arith.cmpi slt, %5, %6 : vector<1x128xi32>
    %c0_1 = arith.constant 0 : index
    %c0_2 = arith.constant 0 : index
    %8 = vector.load %arg2[%c0_1, %c0_2] : memref<1x128xf32, #tpu.memory_space<vmem>>, vector<1x128xf32>
    %c0_3 = arith.constant 0 : index
    %c0_4 = arith.constant 0 : index
    %9 = vector.load %arg3[%c0_3, %c0_4] : memref<128x128xbf16, #tpu.memory_space<vmem>>, vector<128x128xbf16>
    %c0_5 = arith.constant 0 : index
    %c0_6 = arith.constant 0 : index
    %10 = vector.load %arg1[%c0_5, %c0_6] : memref<8x1xf32, #tpu.memory_space<vmem>>, vector<8x1xf32>
    %11 = vector.shape_cast %1 : vector<1x128xf32> to vector<1x128xf32>
    %12 = vector.broadcast %11 : vector<1x128xf32> to vector<8x128xf32>
    %13 = vector.broadcast %10 : vector<8x1xf32> to vector<8x128xf32>
    %14 = vector.broadcast %8 : vector<1x128xf32> to vector<8x128xf32>
    %15 = arith.mulf %13, %14 : vector<8x128xf32>
    %16 = arith.addf %12, %15 : vector<8x128xf32>
    %cst = arith.constant dense<0.000000e+00> : vector<8xf32>
    %17 = vector.multi_reduction <add>, %16, %cst [1] : vector<8x128xf32> to vector<8xf32>
    %18 = vector.shape_cast %17 : vector<8xf32> to vector<8x1xf32>
    %cst_7 = arith.constant 3.125000e-02 : f32
    %19 = vector.broadcast %cst_7 : f32 to vector<8x1xf32>
    %20 = arith.mulf %18, %19 : vector<8x1xf32>
    %21 = vector.broadcast %20 : vector<8x1xf32> to vector<8x128xf32>
    %22 = arith.subf %16, %21 : vector<8x128xf32>
    %cst_8 = arith.constant 0.000000e+00 : f32
    %23 = vector.shape_cast %7 : vector<1x128xi1> to vector<1x128xi1>
    %24 = vector.broadcast %23 : vector<1x128xi1> to vector<8x128xi1>
    %25 = vector.broadcast %cst_8 : f32 to vector<8x128xf32>
    %26 = arith.select %24, %22, %25 : vector<8x128xi1>, vector<8x128xf32>
    %27 = arith.mulf %26, %26 : vector<8x128xf32>
    %cst_9 = arith.constant dense<0.000000e+00> : vector<8xf32>
    %28 = vector.multi_reduction <add>, %27, %cst_9 [1] : vector<8x128xf32> to vector<8xf32>
    %29 = vector.shape_cast %28 : vector<8xf32> to vector<8x1xf32>
    %cst_10 = arith.constant 3.125000e-02 : f32
    %30 = vector.broadcast %cst_10 : f32 to vector<8x1xf32>
    %31 = arith.mulf %29, %30 : vector<8x1xf32>
    %cst_11 = arith.constant 9.99999974E-6 : f32
    %32 = vector.broadcast %cst_11 : f32 to vector<8x1xf32>
    %33 = arith.addf %31, %32 : vector<8x1xf32>
    %34 = math.rsqrt %33 : vector<8x1xf32>
    %35 = vector.broadcast %34 : vector<8x1xf32> to vector<8x128xf32>
    %36 = arith.mulf %26, %35 : vector<8x128xf32>
    %37 = vector.broadcast %2 : vector<1x128xf32> to vector<8x128xf32>
    %38 = arith.mulf %36, %37 : vector<8x128xf32>
    %39 = vector.broadcast %3 : vector<1x128xf32> to vector<8x128xf32>
    %40 = arith.addf %38, %39 : vector<8x128xf32>
    %cst_12 = arith.constant 0.000000e+00 : f32
    %41 = vector.broadcast %cst_12 : f32 to vector<8x128xf32>
    %42 = arith.minimumf %40, %41 : vector<8x128xf32>
    %43 = math.exp %42 : vector<8x128xf32>
    %cst_13 = arith.constant 1.000000e+00 : f32
    %44 = vector.broadcast %cst_13 : f32 to vector<8x128xf32>
    %45 = arith.cmpf oeq, %43, %44 : vector<8x128xf32>
    %cst_14 = arith.constant 1.000000e+00 : f32
    %46 = vector.broadcast %cst_14 : f32 to vector<8x128xf32>
    %47 = arith.subf %43, %46 : vector<8x128xf32>
    %48 = arith.select %45, %40, %47 : vector<8x128xi1>, vector<8x128xf32>
    %cst_15 = arith.constant 0.000000e+00 : f32
    %49 = vector.broadcast %cst_15 : f32 to vector<8x128xf32>
    %50 = arith.cmpf ogt, %40, %49 : vector<8x128xf32>
    %51 = arith.select %50, %40, %48 : vector<8x128xi1>, vector<8x128xf32>
    %52 = arith.truncf %51 : vector<8x128xf32> to vector<8x128xbf16>
    %cst_16 = arith.constant dense<0.000000e+00> : vector<8x128xf32>
    %53 = tpu.matmul %52, %9, %cst_16 {dimension_numbers = #tpu.dot_dimension_numbers<[1], [0], [0], [1], [0, 0, 1, 1], [], []>} : vector<8x128xbf16>, vector<128x128xbf16>, vector<8x128xf32> -> vector<8x128xf32>
    %54 = vector.broadcast %4 : vector<1x128xf32> to vector<8x128xf32>
    %55 = arith.addf %53, %54 : vector<8x128xf32>
    %56 = arith.truncf %55 : vector<8x128xf32> to vector<8x128xbf16>
    %c0_17 = arith.constant 0 : index
    %c0_18 = arith.constant 0 : index
    %57 = vector.load %arg5[%c0_17, %c0_18] : memref<8x128xbf16, #tpu.memory_space<vmem>>, vector<8x128xbf16>
    tpu.vector_store %arg5[%c0_17, %c0_18], %56 {strides = array<i32>} : memref<8x128xbf16, #tpu.memory_space<vmem>>, vector<8x128xbf16>,
    return
  }
  func.func @transform_0(%arg0: i32) -> (i32, i32) {
    %c0_i32 = arith.constant 0 : i32
    %c0_i32_0 = arith.constant 0 : i32
    return %arg0, %c0_i32 : i32, i32
  }
  func.func @transform_1(%arg0: i32) -> (i32, i32) {
    %c0_i32 = arith.constant 0 : i32
    %c0_i32_0 = arith.constant 0 : i32
    %c0_i32_1 = arith.constant 0 : i32
    return %c0_i32, %c0_i32_0 : i32, i32
  }
  func.func @transform_2(%arg0: i32) -> (i32, i32) {
    %c0_i32 = arith.constant 0 : i32
    %c0_i32_0 = arith.constant 0 : i32
    %c0_i32_1 = arith.constant 0 : i32
    return %c0_i32, %c0_i32_0 : i32, i32
  }
  func.func @transform_3(%arg0: i32) -> (i32, i32) {
    %c0_i32 = arith.constant 0 : i32
    %c0_i32_0 = arith.constant 0 : i32
    %c0_i32_1 = arith.constant 0 : i32
    return %c0_i32, %c0_i32_0 : i32, i32
  }
  func.func @transform_4(%arg0: i32) -> (i32, i32) {
    %c0_i32 = arith.constant 0 : i32
    %c0_i32_0 = arith.constant 0 : i32
    return %arg0, %c0_i32 : i32, i32
  }
}

</mosaic_0001>

<llo_original>
// kernel: tpu_custom_call.1
$region0: #{tpu_custom_call.1}
  #allocation0 [shape = 'u32[]', space=smem, size = 0x4, offset = 0x4, fixed_abs, tag = 'smem constant byte address 0x4 - core index']
  #allocation1 [shape = 'u32[144,128]{1,0:T(1,128)}', space=vmem, size = 0x12000, scoped, tag = 'internal scratch']
  %s0 = inlined_call_operand.vmem [shape: f32[16,1], index: 0, kind: input, shape index: {}]
  %s1 = inlined_call_operand.vmem [shape: f32[1,128], index: 1, kind: input, shape index: {}]
  %s2 = inlined_call_operand.hbm [shape: bf16[128,128], index: 2, kind: input, shape index: {}]
  %s3 = inlined_call_operand.vmem [shape: f32[4,128], index: 3, kind: input, shape index: {}]
  %s4 = inlined_call_operand.hbm [shape: bf16[16,32], index: 4, kind: output, shape index: {}]
  %s5 = sld [smem:[#allocation0]]
  $region53: #{tpu_custom_call.1} parent=0
    _
  %s7 = ssub.s32 1, %s5
  %s8 = scalar_select 0, %s7, %s5
  $region1: #{tpu_custom_call.1} parent=0
    #allocation2 [shape = 'u8[32768]{0}', space=vmem, size = 0x8000, scoped, tag = 'input window, operand 2, single buffered']
    #allocation3 [shape = 's32[2]{0}', space=sflag, size = 0x8, scoped, tag = 'scoped memory for tpu_custom_call.1']
    #allocation4 [shape = 's32[2]{0}', space=sflag, size = 0x8, scoped, tag = 'scoped memory for tpu_custom_call.1']
    #allocation5 [shape = 'u8[4096]{0}', space=vmem, size = 0x1000, scoped, tag = 'output window, operand 0']
    %9 = vsyncpa [#allocation3], 0
    %10 = vsyncpa [#allocation4], 0
    %s11 = scalar_lea.sflag [#allocation4], 1
    %12 = vsyncpa %s11, 0
    loop: start=0, step=1, limit=4
    $region2: #{tpu_custom_call.1} parent=1 // loop_pre_header
      _
    $region3: #{tpu_custom_call.1} parent=1 // loop_header
      %s14 = sphi 0, %s18
      %p15 = scmp.ge.s32.totalorder %s14, 4
      %s24 = sphi 0, %s26
      %s27 = sphi 0, %s24
      %s28 = sphi 0, %s27
      %s44 = sphi 0, %s28
      %s48 = sphi 0, %s48
      %s50 = sphi 0, %s48
      %s51 = sphi 0, %s50
      %s65 = sphi 0, %s51
      %s69 = sphi 0, %s69
      %s71 = sphi 0, %s69
      %s72 = sphi 0, %s71
      %s86 = sphi 0, %s72
      %s90 = sphi 0, %s90
      %s92 = sphi 0, %s90
      %s93 = sphi 0, %s92
      %s107 = sphi 0, %s93
      %s113 = sphi 0, %s115
      %s116 = sphi 0, %s113
      %s117 = sphi 0, %s116
      %s133 = sphi 0, %s117
    $region4: #{tpu_custom_call.1} parent=1 // loop_header_branch
      %17 = sbr.rel (%p15) target = $region8
    $region5: #{tpu_custom_call.1} parent=1 // loop_body
      %s19 = ssub.s32 %s14, 1
      %s20 = ssub.s32 %s14, 2
      %s21 = sadd.s32 %s14, 1
      %s22 = ssub.s32 %s14, %s21
      %p23 = scmp.eq.s32.totalorder %s22, 0
      %s25 = sadd.s32 %s24, 1
      %s26 = scalar_select %p23, %s24, %s25
      %p29 = pneg %p23
      %p30 = scmp.eq.s32.totalorder %s14, 1
      %p31 = por %p29, %p30
      %p32 = scmp.ne.s32.totalorder %s24, %s27
      %p33 = scmp.eq.s32.totalorder %s14, 0
      %p34 = por %p32, %p33
      %p35 = scmp.ne.s32.totalorder %s24, %s27
      %p36 = scmp.eq.s32.totalorder %s19, 1
      %p37 = por %p35, %p36
      %p38 = scmp.ne.s32.totalorder %s27, %s28
      %p39 = scmp.eq.s32.totalorder %s19, 0
      %p40 = por %p38, %p39
      %p41 = scmp.ne.s32.totalorder %s27, %s28
      %p42 = scmp.eq.s32.totalorder %s20, 1
      %p43 = por %p41, %p42
      %p45 = scmp.ne.s32.totalorder %s28, %s44
      %p46 = scmp.eq.s32.totalorder %s20, 0
      %p47 = por %p45, %p46
      %s49 = sadd.s32 %s48, 1
      %p52 = scmp.eq.s32.totalorder %s14, 1
      %p53 = scmp.ne.s32.totalorder %s48, %s50
      %p54 = scmp.eq.s32.totalorder %s14, 0
      %p55 = por %p53, %p54
      %p56 = scmp.ne.s32.totalorder %s48, %s50
      %p57 = scmp.eq.s32.totalorder %s19, 1
      %p58 = por %p56, %p57
      %p59 = scmp.ne.s32.totalorder %s50, %s51
      %p60 = scmp.eq.s32.totalorder %s19, 0
      %p61 = por %p59, %p60
      %p62 = scmp.ne.s32.totalorder %s50, %s51
      %p63 = scmp.eq.s32.totalorder %s20, 1
      %p64 = por %p62, %p63
      %p66 = scmp.ne.s32.totalorder %s51, %s65
      %p67 = scmp.eq.s32.totalorder %s20, 0
      %p68 = por %p66, %p67
      %s70 = sadd.s32 %s69, 1
      %p73 = scmp.eq.s32.totalorder %s14, 1
      %p74 = scmp.ne.s32.totalorder %s69, %s71
      %p75 = scmp.eq.s32.totalorder %s14, 0
      %p76 = por %p74, %p75
      %p77 = scmp.ne.s32.totalorder %s69, %s71
      %p78 = scmp.eq.s32.totalorder %s19, 1
      %p79 = por %p77, %p78
      %p80 = scmp.ne.s32.totalorder %s71, %s72
      %p81 = scmp.eq.s32.totalorder %s19, 0
      %p82 = por %p80, %p81
      %p83 = scmp.ne.s32.totalorder %s71, %s72
      %p84 = scmp.eq.s32.totalorder %s20, 1
      %p85 = por %p83, %p84
      %p87 = scmp.ne.s32.totalorder %s72, %s86
      %p88 = scmp.eq.s32.totalorder %s20, 0
      %p89 = por %p87, %p88
      %s91 = sadd.s32 %s90, 1
      %p94 = scmp.eq.s32.totalorder %s14, 1
      %p95 = scmp.ne.s32.totalorder %s90, %s92
      %p96 = scmp.eq.s32.totalorder %s14, 0
      %p97 = por %p95, %p96
      %p98 = scmp.ne.s32.totalorder %s90, %s92
      %p99 = scmp.eq.s32.totalorder %s19, 1
      %p100 = por %p98, %p99
      %p101 = scmp.ne.s32.totalorder %s92, %s93
      %p102 = scmp.eq.s32.totalorder %s19, 0
      %p103 = por %p101, %p102
      %p104 = scmp.ne.s32.totalorder %s92, %s93
      %p105 = scmp.eq.s32.totalorder %s20, 1
      %p106 = por %p104, %p105
      %p108 = scmp.ne.s32.totalorder %s93, %s107
      %p109 = scmp.eq.s32.totalorder %s20, 0
      %p110 = por %p108, %p109
      %s111 = ssub.s32 %s14, %s21
      %p112 = scmp.eq.s32.totalorder %s111, 0
      %s114 = sadd.s32 %s113, 1
      %s115 = scalar_select %p112, %s113, %s114
      %p118 = pneg %p112
      %p119 = scmp.eq.s32.totalorder %s14, 1
      %p120 = por %p118, %p119
      %p121 = scmp.ne.s32.totalorder %s113, %s116
      %p122 = scmp.eq.s32.totalorder %s14, 0
      %p123 = por %p121, %p122
      %p124 = scmp.ne.s32.totalorder %s113, %s116
      %p125 = scmp.eq.s32.totalorder %s19, 1
      %p126 = por %p124, %p125
      %p127 = scmp.ne.s32.totalorder %s116, %s117
      %p128 = scmp.eq.s32.totalorder %s19, 0
      %p129 = por %p127, %p128
      %p130 = scmp.ne.s32.totalorder %s116, %s117
      %p131 = scmp.eq.s32.totalorder %s20, 1
      %p132 = por %p130, %p131
      %p134 = scmp.ne.s32.totalorder %s117, %s133
      %p135 = scmp.eq.s32.totalorder %s20, 0
      %p136 = por %p134, %p135
      %p137 = scmp.le.s32.totalorder 1, %s14
      %p138 = scmp.lt.s32.totalorder %s14, 3
      %p139 = pnand %p137, %p138
      %p140 = pneg %p139
      // Predicated region
      $region9: #{tpu_custom_call.1} parent=5 // pred_check
        _
      $region10: #{tpu_custom_call.1} parent=5 // pred_check_branch
        %142 = sbr.rel (%p139) target = $region12
      $region11: #{tpu_custom_call.1} parent=5 // pred_region
        %s143 = ssub.s32 %s14, 1
        // Predicated region
        $region13: #{tpu_custom_call.1} parent=11 // pred_check
          %p144 = pneg %p61
        $region14: #{tpu_custom_call.1} parent=11 // pred_check_branch
          %146 = sbr.rel (%p144) target = $region16
        $region15: #{tpu_custom_call.1} parent=11 // pred_region
          _
        $region16: #{tpu_custom_call.1} parent=11 // pred_fallthru
          _
        // Predicated region
        $region17: #{tpu_custom_call.1} parent=11 // pred_check
          %p147 = pneg %p82
        $region18: #{tpu_custom_call.1} parent=11 // pred_check_branch
          %149 = sbr.rel (%p147) target = $region20
        $region19: #{tpu_custom_call.1} parent=11 // pred_region
          %s151 = ssub.s32 1024, 1024
          %152 = vsyncadd [#allocation3], %s151
          %s153 = sshll.u32 [#allocation2], 4
          %s154 = int_to_ptr.vmem [resolvable:$true] %s153
          %159 = dma.hbm_to_vmem [thread:$0]  %s2, 1024, %s154, [#allocation3], 64, 64, 4
        $region20: #{tpu_custom_call.1} parent=11 // pred_fallthru
          _
        // Predicated region
        $region21: #{tpu_custom_call.1} parent=11 // pred_check
          %p160 = pneg %p103
        $region22: #{tpu_custom_call.1} parent=11 // pred_check_branch
          %162 = sbr.rel (%p160) target = $region24
        $region23: #{tpu_custom_call.1} parent=11 // pred_region
          _
        $region24: #{tpu_custom_call.1} parent=11 // pred_fallthru
          _
      $region12: #{tpu_custom_call.1} parent=5 // pred_fallthru
        _
      %p163 = scmp.lt.s32.totalorder %s14, 2
      // Predicated region
      $region25: #{tpu_custom_call.1} parent=5 // pred_check
        %p164 = pneg %p163
      $region26: #{tpu_custom_call.1} parent=5 // pred_check_branch
        %166 = sbr.rel (%p164) target = $region28
      $region27: #{tpu_custom_call.1} parent=5 // pred_region
        // Predicated region
        $region29: #{tpu_custom_call.1} parent=27 // pred_check
          %p167 = pneg %p34
        $region30: #{tpu_custom_call.1} parent=27 // pred_check_branch
          %169 = sbr.rel (%p167) target = $region32
        $region31: #{tpu_custom_call.1} parent=27 // pred_region
          %p170 = scmp.lt.s32.totalorder %s14, 1
          %s171 = scalar_select %p170, %s14, 1
          %s172 = smul.addr %s171, 8
          %s173 = scalar_lea.vmem %s0, %s172
        $region32: #{tpu_custom_call.1} parent=27 // pred_fallthru
          _
      $region28: #{tpu_custom_call.1} parent=5 // pred_fallthru
        _
      %p174 = scmp.le.s32.totalorder 1, %s14
      %p175 = scmp.lt.s32.totalorder %s14, 3
      %p176 = pnand %p174, %p175
      %p177 = pneg %p176
      // Predicated region
      $region33: #{tpu_custom_call.1} parent=5 // pred_check
        _
      $region34: #{tpu_custom_call.1} parent=5 // pred_check_branch
        %179 = sbr.rel (%p176) target = $region36
      $region35: #{tpu_custom_call.1} parent=5 // pred_region
        %s180 = ssub.s32 %s14, 1
        // Predicated region
        $region37: #{tpu_custom_call.1} parent=35 // pred_check
          %p181 = pneg %p82
        $region38: #{tpu_custom_call.1} parent=35 // pred_check_branch
          %183 = sbr.rel (%p181) target = $region40
        $region39: #{tpu_custom_call.1} parent=35 // pred_region
          %184 = dma.done [#allocation3], 1024
        $region40: #{tpu_custom_call.1} parent=35 // pred_fallthru
          _
        %p185 = scmp.lt.s32.totalorder %s19, 1
        %s186 = scalar_select %p185, %s19, 1
        %s187 = smul.addr %s186, 8
        %s188 = scalar_lea.vmem %s0, %s187
        %p189 = pneg %p40
        %p190 = pneg %p37
        %p191 = pneg %p61
        %p192 = pneg %p58
        %p193 = pneg %p82
        %p194 = pneg %p79
        %p195 = pneg %p103
        %p196 = pneg %p100
        %p197 = pneg %p129
        %p198 = pneg %p126
        %s199 = sand.u32 %s116, 1
        %s200 = scalar_lea.sflag [#allocation4], %s199
        %s201 = sand.u32 %s116, 1
        %s202 = smul.addr %s201, 4
        %s203 = scalar_lea.vmem [#allocation5], %s202
        %p204 = scmp.lt.s32.totalorder %s19, 1
        %s205 = scalar_select %p204, %s19, 1
        %s206 = smul.addr %s205, 8
        %s207 = scalar_lea.vmem %s0, %s206
        %v209 = vld [vmem:[%s3] sm:$0xf]
        %v210 = vlaneseq
        %v211 = vand.u32 %v210, 127
        %vm212 = vcmp.lt.s32.totalorder %v211, 32
        %v213 = vld [vmem:[%s1] sm:$0x1]
        %v214 = vld [vmem:[#allocation2] sm:$0xf]
        %v215 = vld [vmem:[#allocation2 + $0x4] sm:$0xf]
        %v216 = vld [vmem:[#allocation2 + $0x8] sm:$0xf]
        %v217 = vld [vmem:[#allocation2 + $0xc] sm:$0xf]
        %v218 = vld [vmem:[#allocation2 + $0x10] sm:$0xf]
        %v219 = vld [vmem:[#allocation2 + $0x14] sm:$0xf]
        %v220 = vld [vmem:[#allocation2 + $0x18] sm:$0xf]
        %v221 = vld [vmem:[#allocation2 + $0x1c] sm:$0xf]
        %v222 = vld [vmem:[#allocation2 + $0x20] sm:$0xf]
        %v223 = vld [vmem:[#allocation2 + $0x24] sm:$0xf]
        %v224 = vld [vmem:[#allocation2 + $0x28] sm:$0xf]
        %v225 = vld [vmem:[#allocation2 + $0x2c] sm:$0xf]
        %v226 = vld [vmem:[#allocation2 + $0x30] sm:$0xf]
        %v227 = vld [vmem:[#allocation2 + $0x34] sm:$0xf]
        %v228 = vld [vmem:[#allocation2 + $0x38] sm:$0xf]
        %v229 = vld [vmem:[#allocation2 + $0x3c] sm:$0xf]
        %v230 = vld [vmem:[%s207] sm:$0xff]
        %v231 = vlaneseq
        %v232 = vshrl.u32 %v231, 7
        %v233 = vsub.s32 0, %v232
        %v234 = vrot.slane %v209, %v233
        %236 = vset.pattern.permute.xlu0 0
        %237 = vperm.xlu0 %236, %v230
        %v238 = vpop.permute.xlu0 %237
        %v241 = vlaneseq
        %v242 = vshrl.u32 %v241, 7
        %v243 = vsub.s32 0, %v242
        %v244 = vrot.slane %v213, %v243
        %v246 = vmul.f32 %v238, %v244
        %v247 = vadd.f32 %v234, %v246
        %248 = vadd.xlane.f32.xlu0 %v247
        %v249 = vpop.xlane.xlu0 %248
        %v250 = vmul.f32 %v249, 0.03125
        %v251 = vsub.f32 %v247, %v250
        %v252 = vsel %vm212, 1, 0
        %vm253 = vcmp.eq.s32.totalorder %v252, 1
        %v254 = vsel %vm253, %v251, 0.0
        %v255 = vmul.f32 %v254, %v254
        %256 = vadd.xlane.f32.xlu0 %v255
        %v257 = vpop.xlane.xlu0 %256
        %v258 = vmul.f32 %v257, 0.03125
        %v259 = vadd.f32 %v258, 1e-05
        %v260 = vrsqrt.pop %v259
        %v261 = vmul.f32 %v254, %v260
        %v262 = vlaneseq
        %v263 = vshrl.u32 %v262, 7
        %v264 = vsub.s32 1, %v263
        %v265 = vrot.slane %v209, %v264
        %v266 = vmul.f32 %v261, %v265
        %v267 = vlaneseq
        %v268 = vshrl.u32 %v267, 7
        %v269 = vsub.s32 2, %v268
        %v270 = vrot.slane %v209, %v269
        %v271 = vadd.f32 %v266, %v270
        %v272 = vmin.f32 %v271, 0.0
        %v273 = vmul.f32 %v272, 1.442695
        %v274 = vpow.pop %v273
        %vm275 = vcmp.eq.f32.partialorder %v274, 1.0
        %v276 = vsub.f32 %v274, 1.0
        %v277 = vsel %vm275, %v271, %v276
        %vm278 = vcmp.gt.f32.partialorder %v271, 0.0
        %v279 = vsel %vm278, %v271, %v277
        %v280 = vpack.c.bf16 %v279, %v279
        %v281 = vlaneseq
        %v282 = vshrl.u32 %v281, 7
        %v283 = vsub.s32 3, %v282
        %v284 = vrot.slane %v209, %v283
        %v301 = vunpack.c.l.b16 %v214
        %v302 = vunpack.c.l.b16 %v215
        %v303 = vunpack.c.l.b16 %v216
        %v304 = vunpack.c.l.b16 %v217
        %v305 = vunpack.c.l.b16 %v218
        %v306 = vunpack.c.l.b16 %v219
        %v307 = vunpack.c.l.b16 %v220
        %v308 = vunpack.c.l.b16 %v221
        %v309 = vunpack.c.l.b16 %v222
        %v310 = vunpack.c.l.b16 %v223
        %v311 = vunpack.c.l.b16 %v224
        %v312 = vunpack.c.l.b16 %v225
        %v313 = vunpack.c.l.b16 %v226
        %v314 = vunpack.c.l.b16 %v227
        %v315 = vunpack.c.l.b16 %v228
        %v316 = vunpack.c.l.b16 %v229
        %v317 = vpack.c.b16 %v302, %v301
        %v318 = vpack.c.b16 %v304, %v303
        %v319 = vpack.c.b16 %v306, %v305
        %v320 = vpack.c.b16 %v308, %v307
        %v321 = vpack.c.b16 %v310, %v309
        %v322 = vpack.c.b16 %v312, %v311
        %v323 = vpack.c.b16 %v314, %v313
        %v324 = vpack.c.b16 %v316, %v315
        %333 = vmatprep.subr.bf16.mxu0 0
        %334 = vmatpush1.bf16.msra.mxu0 %v317
        %335 = vmatprep.subr.bf16.mxu0 0
        %336 = vmatpush1.bf16.msra.mxu0 %v318
        %337 = vmatprep.subr.bf16.mxu0 0
        %338 = vmatpush1.bf16.msra.mxu0 %v319
        %339 = vmatprep.subr.bf16.mxu0 0
        %340 = vmatpush1.bf16.msra.mxu0 %v320
        %341 = vmatprep.subr.bf16.mxu0 0
        %342 = vmatpush1.bf16.msra.mxu0 %v321
        %343 = vmatprep.subr.bf16.mxu0 0
        %344 = vmatpush1.bf16.msra.mxu0 %v322
        %345 = vmatprep.subr.bf16.mxu0 0
        %346 = vmatpush1.bf16.msra.mxu0 %v323
        %347 = vmatprep.subr.bf16.mxu0 0
        %348 = vmatpush1.bf16.msra.mxu0 %v324
        %349 = vmatprep.subr.bf16.mxu0 0
        %350 = vmatpush1.bf16.msra.mxu0 0
        %351 = vmatprep.subr.bf16.mxu0 0
        %352 = vmatpush1.bf16.msra.mxu0 0
        %353 = vmatprep.subr.bf16.mxu0 0
        %354 = vmatpush1.bf16.msra.mxu0 0
        %355 = vmatprep.subr.bf16.mxu0 0
        %356 = vmatpush1.bf16.msra.mxu0 0
        %357 = vmatprep.subr.bf16.mxu0 0
        %358 = vmatpush1.bf16.msra.mxu0 0
        %359 = vmatprep.subr.bf16.mxu0 0
        %360 = vmatpush1.bf16.msra.mxu0 0
        %361 = vmatprep.subr.bf16.mxu0 0
        %362 = vmatpush1.bf16.msra.mxu0 0
        %363 = vmatprep.subr.bf16.mxu0 0
        %364 = vmatpush1.bf16.msra.mxu0 0
        %365 = vmatprep.mubr.bf16.mxu0 0
        %366 = vmatmul.mubr.bf16.gmra.mrb[0].mxu0 %v280
        %v367 = vpop.f32.mrb[0].mxu0
        %v368 = vadd.f32 %v284, %v367
        %v369 = vpop.f32.mrb[0].mxu0
        %v370 = vpop.f32.mrb[0].mxu0
        %v371 = vpop.f32.mrb[0].mxu0
        %372 = vdwg.mxu0
        %v373 = vpack.c.bf16 %v368, %v368
        %374 = vst [vmem:[%s203] sm:$0xf] %v373
        %s375 = sand.u32 %s116, 1
        %s376 = scalar_lea.sflag [#allocation4], %s375
        %s377 = sand.u32 %s116, 1
        %s378 = smul.addr %s377, 4
        %s379 = scalar_lea.vmem [#allocation5], %s378
        // Predicated region
        $region41: #{tpu_custom_call.1} parent=35 // pred_check
          %p380 = pneg %p126
        $region42: #{tpu_custom_call.1} parent=35 // pred_check_branch
          %382 = sbr.rel (%p380) target = $region44
        $region43: #{tpu_custom_call.1} parent=35 // pred_region
          %s384 = ssub.s32 64, 64
          %385 = vsyncadd %s376, %s384
          %s386 = smul.addr %s19, 64
          %s387 = scalar_lea.hbm %s4, %s386
          %s389 = sshll.u32 %s379, 4
          %s390 = int_to_ptr.vmem [resolvable:$true] %s389
          %392 = dma.vmem_to_hbm [thread:$0]  %s390, 64, %s387, %s376
        $region44: #{tpu_custom_call.1} parent=35 // pred_fallthru
          _
      $region36: #{tpu_custom_call.1} parent=5 // pred_fallthru
        _
      %p393 = scmp.le.s32.totalorder 2, %s14
      // Predicated region
      $region45: #{tpu_custom_call.1} parent=5 // pred_check
        %p394 = pneg %p393
      $region46: #{tpu_custom_call.1} parent=5 // pred_check_branch
        %396 = sbr.rel (%p394) target = $region48
      $region47: #{tpu_custom_call.1} parent=5 // pred_region
        %s397 = ssub.s32 %s14, 2
        // Predicated region
        $region49: #{tpu_custom_call.1} parent=47 // pred_check
          %p398 = pneg %p132
        $region50: #{tpu_custom_call.1} parent=47 // pred_check_branch
          %400 = sbr.rel (%p398) target = $region52
        $region51: #{tpu_custom_call.1} parent=47 // pred_region
          %s401 = sand.u32 %s117, 1
          %s402 = scalar_lea.sflag [#allocation4], %s401
          %s403 = sand.u32 %s117, 1
          %s404 = smul.addr %s403, 4
          %s405 = scalar_lea.vmem [#allocation5], %s404
          %406 = dma.done %s402, 64
        $region52: #{tpu_custom_call.1} parent=47 // pred_fallthru
          _
      $region48: #{tpu_custom_call.1} parent=5 // pred_fallthru
        _
    $region6: #{tpu_custom_call.1} parent=1 // loop_footer
      %s18 = sadd.s32 1, %s14
    $region7: #{tpu_custom_call.1} parent=1 // loop_footer_branch
      %13 = sbr.rel target = $region3
    $region8: #{tpu_custom_call.1} parent=1 // loop_exit
      _
    %407 = vsyncpa [#allocation3], 1
    %s408 = scalar_lea.sflag [#allocation3], 1
    %409 = vsyncpa %s408, 1
    %410 = vsyncpa [#allocation4], 1
    %s411 = scalar_lea.sflag [#allocation4], 1
    %412 = vsyncpa %s411, 1

// kernel: tpu_custom_call.1
$region0: #{tpu_custom_call.1}
  #allocation0 [shape = 'u32[]', space=smem, size = 0x4, offset = 0x4, fixed_abs, tag = 'smem constant byte address 0x4 - core index']
  #allocation1 [shape = 'u32[144,128]{1,0:T(1,128)}', space=vmem, size = 0x12000, scoped, tag = 'internal scratch']
  %s0 = inlined_call_operand.vmem [shape: f32[16,1], index: 0, kind: input, shape index: {}]
  %s1 = inlined_call_operand.vmem [shape: f32[1,128], index: 1, kind: input, shape index: {}]
  %s2 = inlined_call_operand.hbm [shape: bf16[128,128], index: 2, kind: input, shape index: {}]
  %s3 = inlined_call_operand.vmem [shape: f32[4,128], index: 3, kind: input, shape index: {}]
  %s4 = inlined_call_operand.hbm [shape: bf16[16,32], index: 4, kind: output, shape index: {}]
  %s5 = sld [smem:[#allocation0]]
  $region53: #{tpu_custom_call.1} parent=0
    _
  %s7 = ssub.s32 1, %s5
  %s8 = scalar_select 0, %s7, %s5
  $region1: #{tpu_custom_call.1} parent=0
    #allocation2 [shape = 'u8[32768]{0}', space=vmem, size = 0x8000, scoped, tag = 'input window, operand 2, single buffered']
    #allocation3 [shape = 's32[2]{0}', space=sflag, size = 0x8, scoped, tag = 'scoped memory for tpu_custom_call.1']
    #allocation4 [shape = 's32[2]{0}', space=sflag, size = 0x8, scoped, tag = 'scoped memory for tpu_custom_call.1']
    #allocation5 [shape = 'u8[4096]{0}', space=vmem, size = 0x1000, scoped, tag = 'output window, operand 0']
    %9 = vsyncpa [#allocation3], 0
    %10 = vsyncpa [#allocation4], 0
    %s11 = scalar_lea.sflag [#allocation4], 1
    %12 = vsyncpa %s11, 0
    loop: start=0, step=1, limit=4
    $region2: #{tpu_custom_call.1} parent=1 // loop_pre_header
      _
    $region3: #{tpu_custom_call.1} parent=1 // loop_header
      %s14 = sphi 0, %s18
      %p15 = scmp.ge.s32.totalorder %s14, 4
      %s24 = sphi 0, %s26
      %s27 = sphi 0, %s24
      %s28 = sphi 0, %s27
      %s44 = sphi 0, %s28
      %s48 = sphi 0, %s48
      %s50 = sphi 0, %s48
      %s51 = sphi 0, %s50
      %s65 = sphi 0, %s51
      %s69 = sphi 0, %s69
      %s71 = sphi 0, %s69
      %s72 = sphi 0, %s71
      %s86 = sphi 0, %s72
      %s90 = sphi 0, %s90
      %s92 = sphi 0, %s90
      %s93 = sphi 0, %s92
      %s107 = sphi 0, %s93
      %s113 = sphi 0, %s115
      %s116 = sphi 0, %s113
      %s117 = sphi 0, %s116
      %s133 = sphi 0, %s117
    $region4: #{tpu_custom_call.1} parent=1 // loop_header_branch
      %17 = sbr.rel (%p15) target = $region8
    $region5: #{tpu_custom_call.1} parent=1 // loop_body
      %s19 = ssub.s32 %s14, 1
      %s20 = ssub.s32 %s14, 2
      %s21 = sadd.s32 %s14, 1
      %s22 = ssub.s32 %s14, %s21
      %p23 = scmp.eq.s32.totalorder %s22, 0
      %s25 = sadd.s32 %s24, 1
      %s26 = scalar_select %p23, %s24, %s25
      %p29 = pneg %p23
      %p30 = scmp.eq.s32.totalorder %s14, 1
      %p31 = por %p29, %p30
      %p32 = scmp.ne.s32.totalorder %s24, %s27
      %p33 = scmp.eq.s32.totalorder %s14, 0
      %p34 = por %p32, %p33
      %p35 = scmp.ne.s32.totalorder %s24, %s27
      %p36 = scmp.eq.s32.totalorder %s19, 1
      %p37 = por %p35, %p36
      %p38 = scmp.ne.s32.totalorder %s27, %s28
      %p39 = scmp.eq.s32.totalorder %s19, 0
      %p40 = por %p38, %p39
      %p41 = scmp.ne.s32.totalorder %s27, %s28
      %p42 = scmp.eq.s32.totalorder %s20, 1
      %p43 = por %p41, %p42
      %p45 = scmp.ne.s32.totalorder %s28, %s44
      %p46 = scmp.eq.s32.totalorder %s20, 0
      %p47 = por %p45, %p46
      %s49 = sadd.s32 %s48, 1
      %p52 = scmp.eq.s32.totalorder %s14, 1
      %p53 = scmp.ne.s32.totalorder %s48, %s50
      %p54 = scmp.eq.s32.totalorder %s14, 0
      %p55 = por %p53, %p54
      %p56 = scmp.ne.s32.totalorder %s48, %s50
      %p57 = scmp.eq.s32.totalorder %s19, 1
      %p58 = por %p56, %p57
      %p59 = scmp.ne.s32.totalorder %s50, %s51
      %p60 = scmp.eq.s32.totalorder %s19, 0
      %p61 = por %p59, %p60
      %p62 = scmp.ne.s32.totalorder %s50, %s51
      %p63 = scmp.eq.s32.totalorder %s20, 1
      %p64 = por %p62, %p63
      %p66 = scmp.ne.s32.totalorder %s51, %s65
      %p67 = scmp.eq.s32.totalorder %s20, 0
      %p68 = por %p66, %p67
      %s70 = sadd.s32 %s69, 1
      %p73 = scmp.eq.s32.totalorder %s14, 1
      %p74 = scmp.ne.s32.totalorder %s69, %s71
      %p75 = scmp.eq.s32.totalorder %s14, 0
      %p76 = por %p74, %p75
      %p77 = scmp.ne.s32.totalorder %s69, %s71
      %p78 = scmp.eq.s32.totalorder %s19, 1
      %p79 = por %p77, %p78
      %p80 = scmp.ne.s32.totalorder %s71, %s72
      %p81 = scmp.eq.s32.totalorder %s19, 0
      %p82 = por %p80, %p81
      %p83 = scmp.ne.s32.totalorder %s71, %s72
      %p84 = scmp.eq.s32.totalorder %s20, 1
      %p85 = por %p83, %p84
      %p87 = scmp.ne.s32.totalorder %s72, %s86
      %p88 = scmp.eq.s32.totalorder %s20, 0
      %p89 = por %p87, %p88
      %s91 = sadd.s32 %s90, 1
      %p94 = scmp.eq.s32.totalorder %s14, 1
      %p95 = scmp.ne.s32.totalorder %s90, %s92
      %p96 = scmp.eq.s32.totalorder %s14, 0
      %p97 = por %p95, %p96
      %p98 = scmp.ne.s32.totalorder %s90, %s92
      %p99 = scmp.eq.s32.totalorder %s19, 1
      %p100 = por %p98, %p99
      %p101 = scmp.ne.s32.totalorder %s92, %s93
      %p102 = scmp.eq.s32.totalorder %s19, 0
      %p103 = por %p101, %p102
      %p104 = scmp.ne.s32.totalorder %s92, %s93
      %p105 = scmp.eq.s32.totalorder %s20, 1
      %p106 = por %p104, %p105
      %p108 = scmp.ne.s32.totalorder %s93, %s107
      %p109 = scmp.eq.s32.totalorder %s20, 0
      %p110 = por %p108, %p109
      %s111 = ssub.s32 %s14, %s21
      %p112 = scmp.eq.s32.totalorder %s111, 0
      %s114 = sadd.s32 %s113, 1
      %s115 = scalar_select %p112, %s113, %s114
      %p118 = pneg %p112
      %p119 = scmp.eq.s32.totalorder %s14, 1
      %p120 = por %p118, %p119
      %p121 = scmp.ne.s32.totalorder %s113, %s116
      %p122 = scmp.eq.s32.totalorder %s14, 0
      %p123 = por %p121, %p122
      %p124 = scmp.ne.s32.totalorder %s113, %s116
      %p125 = scmp.eq.s32.totalorder %s19, 1
      %p126 = por %p124, %p125
      %p127 = scmp.ne.s32.totalorder %s116, %s117
      %p128 = scmp.eq.s32.totalorder %s19, 0
      %p129 = por %p127, %p128
      %p130 = scmp.ne.s32.totalorder %s116, %s117
      %p131 = scmp.eq.s32.totalorder %s20, 1
      %p132 = por %p130, %p131
      %p134 = scmp.ne.s32.totalorder %s117, %s133
      %p135 = scmp.eq.s32.totalorder %s20, 0
      %p136 = por %p134, %p135
      %p137 = scmp.le.s32.totalorder 1, %s14
      %p138 = scmp.lt.s32.totalorder %s14, 3
      %p139 = pnand %p137, %p138
      %p140 = pneg %p139
      // Predicated region
      $region9: #{tpu_custom_call.1} parent=5 // pred_check
        _
      $region10: #{tpu_custom_call.1} parent=5 // pred_check_branch
        %142 = sbr.rel (%p139) target = $region12
      $region11: #{tpu_custom_call.1} parent=5 // pred_region
        %s143 = ssub.s32 %s14, 1
        // Predicated region
        $region13: #{tpu_custom_call.1} parent=11 // pred_check
          %p144 = pneg %p61
        $region14: #{tpu_custom_call.1} parent=11 // pred_check_branch
          %146 = sbr.rel (%p144) target = $region16
        $region15: #{tpu_custom_call.1} parent=11 // pred_region
          _
        $region16: #{tpu_custom_call.1} parent=11 // pred_fallthru
          _
        // Predicated region
        $region17: #{tpu_custom_call.1} parent=11 // pred_check
          %p147 = pneg %p82
        $region18: #{tpu_custom_call.1} parent=11 // pred_check_branch
          %149 = sbr.rel (%p147) target = $region20
        $region19: #{tpu_custom_call.1} parent=11 // pred_region
          %s151 = ssub.s32 1024, 1024
          %152 = vsyncadd [#allocation3], %s151
          %s153 = sshll.u32 [#allocation2], 4
          %s154 = int_to_ptr.vmem [resolvable:$true] %s153
          %159 = dma.hbm_to_vmem [thread:$0]  %s2, 1024, %s154, [#allocation3], 64, 64, 4
        $region20: #{tpu_custom_call.1} parent=11 // pred_fallthru
          _
        // Predicated region
        $region21: #{tpu_custom_call.1} parent=11 // pred_check
          %p160 = pneg %p103
        $region22: #{tpu_custom_call.1} parent=11 // pred_check_branch
          %162 = sbr.rel (%p160) target = $region24
        $region23: #{tpu_custom_call.1} parent=11 // pred_region
          _
        $region24: #{tpu_custom_call.1} parent=11 // pred_fallthru
          _
      $region12: #{tpu_custom_call.1} parent=5 // pred_fallthru
        _
      %p163 = scmp.lt.s32.totalorder %s14, 2
      // Predicated region
      $region25: #{tpu_custom_call.1} parent=5 // pred_check
        %p164 = pneg %p163
      $region26: #{tpu_custom_call.1} parent=5 // pred_check_branch
        %166 = sbr.rel (%p164) target = $region28
      $region27: #{tpu_custom_call.1} parent=5 // pred_region
        // Predicated region
        $region29: #{tpu_custom_call.1} parent=27 // pred_check
          %p167 = pneg %p34
        $region30: #{tpu_custom_call.1} parent=27 // pred_check_branch
          %169 = sbr.rel (%p167) target = $region32
        $region31: #{tpu_custom_call.1} parent=27 // pred_region
          %p170 = scmp.lt.s32.totalorder %s14, 1
          %s171 = scalar_select %p170, %s14, 1
          %s172 = smul.addr %s171, 8
          %s173 = scalar_lea.vmem %s0, %s172
        $region32: #{tpu_custom_call.1} parent=27 // pred_fallthru
          _
      $region28: #{tpu_custom_call.1} parent=5 // pred_fallthru
        _
      %p174 = scmp.le.s32.totalorder 1, %s14
      %p175 = scmp.lt.s32.totalorder %s14, 3
      %p176 = pnand %p174, %p175
      %p177 = pneg %p176
      // Predicated region
      $region33: #{tpu_custom_call.1} parent=5 // pred_check
        _
      $region34: #{tpu_custom_call.1} parent=5 // pred_check_branch
        %179 = sbr.rel (%p176) target = $region36
      $region35: #{tpu_custom_call.1} parent=5 // pred_region
        %s180 = ssub.s32 %s14, 1
        // Predicated region
        $region37: #{tpu_custom_call.1} parent=35 // pred_check
          %p181 = pneg %p82
        $region38: #{tpu_custom_call.1} parent=35 // pred_check_branch
          %183 = sbr.rel (%p181) target = $region40
        $region39: #{tpu_custom_call.1} parent=35 // pred_region
          %184 = dma.done [#allocation3], 1024
        $region40: #{tpu_custom_call.1} parent=35 // pred_fallthru
          _
        %p185 = scmp.lt.s32.totalorder %s19, 1
        %s186 = scalar_select %p185, %s19, 1
        %s187 = smul.addr %s186, 8
        %s188 = scalar_lea.vmem %s0, %s187
        %p189 = pneg %p40
        %p190 = pneg %p37
        %p191 = pneg %p61
        %p192 = pneg %p58
        %p193 = pneg %p82
        %p194 = pneg %p79
        %p195 = pneg %p103
        %p196 = pneg %p100
        %p197 = pneg %p129
        %p198 = pneg %p126
        %s199 = sand.u32 %s116, 1
        %s200 = scalar_lea.sflag [#allocation4], %s199
        %s201 = sand.u32 %s116, 1
        %s202 = smul.addr %s201, 4
        %s203 = scalar_lea.vmem [#allocation5], %s202
        %p204 = scmp.lt.s32.totalorder %s19, 1
        %s205 = scalar_select %p204, %s19, 1
        %s206 = smul.addr %s205, 8
        %s207 = scalar_lea.vmem %s0, %s206
        %v209 = vld [vmem:[%s3] sm:$0xf]
        %v210 = vlaneseq
        %v211 = vand.u32 %v210, 127
        %vm212 = vcmp.lt.s32.totalorder %v211, 32
        %v213 = vld [vmem:[%s1] sm:$0x1]
        %v214 = vld [vmem:[#allocation2] sm:$0xf]
        %v215 = vld [vmem:[#allocation2 + $0x4] sm:$0xf]
        %v216 = vld [vmem:[#allocation2 + $0x8] sm:$0xf]
        %v217 = vld [vmem:[#allocation2 + $0xc] sm:$0xf]
        %v218 = vld [vmem:[#allocation2 + $0x10] sm:$0xf]
        %v219 = vld [vmem:[#allocation2 + $0x14] sm:$0xf]
        %v220 = vld [vmem:[#allocation2 + $0x18] sm:$0xf]
        %v221 = vld [vmem:[#allocation2 + $0x1c] sm:$0xf]
        %v222 = vld [vmem:[#allocation2 + $0x20] sm:$0xf]
        %v223 = vld [vmem:[#allocation2 + $0x24] sm:$0xf]
        %v224 = vld [vmem:[#allocation2 + $0x28] sm:$0xf]
        %v225 = vld [vmem:[#allocation2 + $0x2c] sm:$0xf]
        %v226 = vld [vmem:[#allocation2 + $0x30] sm:$0xf]
        %v227 = vld [vmem:[#allocation2 + $0x34] sm:$0xf]
        %v228 = vld [vmem:[#allocation2 + $0x38] sm:$0xf]
        %v229 = vld [vmem:[#allocation2 + $0x3c] sm:$0xf]
        %v230 = vld [vmem:[%s207] sm:$0xff]
        %v231 = vlaneseq
        %v232 = vshrl.u32 %v231, 7
        %v233 = vsub.s32 0, %v232
        %v234 = vrot.slane %v209, %v233
        %236 = vset.pattern.permute.xlu0 0
        %237 = vperm.xlu0 %236, %v230
        %v238 = vpop.permute.xlu0 %237
        %v241 = vlaneseq
        %v242 = vshrl.u32 %v241, 7
        %v243 = vsub.s32 0, %v242
        %v244 = vrot.slane %v213, %v243
        %v246 = vmul.f32 %v238, %v244
        %v247 = vadd.f32 %v234, %v246
        %248 = vadd.xlane.f32.xlu0 %v247
        %v249 = vpop.xlane.xlu0 %248
        %v250 = vmul.f32 %v249, 0.03125
        %v251 = vsub.f32 %v247, %v250
        %v252 = vsel %vm212, 1, 0
        %vm253 = vcmp.eq.s32.totalorder %v252, 1
        %v254 = vsel %vm253, %v251, 0.0
        %v255 = vmul.f32 %v254, %v254
        %256 = vadd.xlane.f32.xlu0 %v255
        %v257 = vpop.xlane.xlu0 %256
        %v258 = vmul.f32 %v257, 0.03125
        %v259 = vadd.f32 %v258, 1e-05
        %v260 = vrsqrt.pop %v259
        %v261 = vmul.f32 %v254, %v260
        %v262 = vlaneseq
        %v263 = vshrl.u32 %v262, 7
        %v264 = vsub.s32 1, %v263
        %v265 = vrot.slane %v209, %v264
        %v266 = vmul.f32 %v261, %v265
        %v267 = vlaneseq
        %v268 = vshrl.u32 %v267, 7
        %v269 = vsub.s32 2, %v268
        %v270 = vrot.slane %v209, %v269
        %v271 = vadd.f32 %v266, %v270
        %v272 = vmin.f32 %v271, 0.0
        %v273 = vmul.f32 %v272, 1.442695
        %v274 = vpow.pop %v273
        %vm275 = vcmp.eq.f32.partialorder %v274, 1.0
        %v276 = vsub.f32 %v274, 1.0
        %v277 = vsel %vm275, %v271, %v276
        %vm278 = vcmp.gt.f32.partialorder %v271, 0.0
        %v279 = vsel %vm278, %v271, %v277
        %v280 = vpack.c.bf16 %v279, %v279
        %v281 = vlaneseq
        %v282 = vshrl.u32 %v281, 7
        %v283 = vsub.s32 3, %v282
        %v284 = vrot.slane %v209, %v283
        %v301 = vunpack.c.l.b16 %v214
        %v302 = vunpack.c.l.b16 %v215
        %v303 = vunpack.c.l.b16 %v216
        %v304 = vunpack.c.l.b16 %v217
        %v305 = vunpack.c.l.b16 %v218
        %v306 = vunpack.c.l.b16 %v219
        %v307 = vunpack.c.l.b16 %v220
        %v308 = vunpack.c.l.b16 %v221
        %v309 = vunpack.c.l.b16 %v222
        %v310 = vunpack.c.l.b16 %v223
        %v311 = vunpack.c.l.b16 %v224
        %v312 = vunpack.c.l.b16 %v225
        %v313 = vunpack.c.l.b16 %v226
        %v314 = vunpack.c.l.b16 %v227
        %v315 = vunpack.c.l.b16 %v228
        %v316 = vunpack.c.l.b16 %v229
        %v317 = vpack.c.b16 %v302, %v301
        %v318 = vpack.c.b16 %v304, %v303
        %v319 = vpack.c.b16 %v306, %v305
        %v320 = vpack.c.b16 %v308, %v307
        %v321 = vpack.c.b16 %v310, %v309
        %v322 = vpack.c.b16 %v312, %v311
        %v323 = vpack.c.b16 %v314, %v313
        %v324 = vpack.c.b16 %v316, %v315
        %333 = vmatprep.subr.bf16.mxu0 0
        %334 = vmatpush1.bf16.msra.mxu0 %v317
        %335 = vmatprep.subr.bf16.mxu0 0
        %336 = vmatpush1.bf16.msra.mxu0 %v318
        %337 = vmatprep.subr.bf16.mxu0 0
        %338 = vmatpush1.bf16.msra.mxu0 %v319
        %339 = vmatprep.subr.bf16.mxu0 0
        %340 = vmatpush1.bf16.msra.mxu0 %v320
        %341 = vmatprep.subr.bf16.mxu0 0
        %342 = vmatpush1.bf16.msra.mxu0 %v321
        %343 = vmatprep.subr.bf16.mxu0 0
        %344 = vmatpush1.bf16.msra.mxu0 %v322
        %345 = vmatprep.subr.bf16.mxu0 0
        %346 = vmatpush1.bf16.msra.mxu0 %v323
        %347 = vmatprep.subr.bf16.mxu0 0
        %348 = vmatpush1.bf16.msra.mxu0 %v324
        %349 = vmatprep.subr.bf16.mxu0 0
        %350 = vmatpush1.bf16.msra.mxu0 0
        %351 = vmatprep.subr.bf16.mxu0 0
        %352 = vmatpush1.bf16.msra.mxu0 0
        %353 = vmatprep.subr.bf16.mxu0 0
        %354 = vmatpush1.bf16.msra.mxu0 0
        %355 = vmatprep.subr.bf16.mxu0 0
        %356 = vmatpush1.bf16.msra.mxu0 0
        %357 = vmatprep.subr.bf16.mxu0 0
        %358 = vmatpush1.bf16.msra.mxu0 0
        %359 = vmatprep.subr.bf16.mxu0 0
        %360 = vmatpush1.bf16.msra.mxu0 0
        %361 = vmatprep.subr.bf16.mxu0 0
        %362 = vmatpush1.bf16.msra.mxu0 0
        %363 = vmatprep.subr.bf16.mxu0 0
        %364 = vmatpush1.bf16.msra.mxu0 0
        %365 = vmatprep.mubr.bf16.mxu0 0
        %366 = vmatmul.mubr.bf16.gmra.mrb[0].mxu0 %v280
        %v367 = vpop.f32.mrb[0].mxu0
        %v368 = vadd.f32 %v284, %v367
        %v369 = vpop.f32.mrb[0].mxu0
        %v370 = vpop.f32.mrb[0].mxu0
        %v371 = vpop.f32.mrb[0].mxu0
        %372 = vdwg.mxu0
        %v373 = vpack.c.bf16 %v368, %v368
        %374 = vst [vmem:[%s203] sm:$0xf] %v373
        %s375 = sand.u32 %s116, 1
        %s376 = scalar_lea.sflag [#allocation4], %s375
        %s377 = sand.u32 %s116, 1
        %s378 = smul.addr %s377, 4
        %s379 = scalar_lea.vmem [#allocation5], %s378
        // Predicated region
        $region41: #{tpu_custom_call.1} parent=35 // pred_check
          %p380 = pneg %p126
        $region42: #{tpu_custom_call.1} parent=35 // pred_check_branch
          %382 = sbr.rel (%p380) target = $region44
        $region43: #{tpu_custom_call.1} parent=35 // pred_region
          %s384 = ssub.s32 64, 64
          %385 = vsyncadd %s376, %s384
          %s386 = smul.addr %s19, 64
          %s387 = scalar_lea.hbm %s4, %s386
          %s389 = sshll.u32 %s379, 4
          %s390 = int_to_ptr.vmem [resolvable:$true] %s389
          %392 = dma.vmem_to_hbm [thread:$0]  %s390, 64, %s387, %s376
        $region44: #{tpu_custom_call.1} parent=35 // pred_fallthru
          _
      $region36: #{tpu_custom_call.1} parent=5 // pred_fallthru
        _
      %p393 = scmp.le.s32.totalorder 2, %s14
      // Predicated region
      $region45: #{tpu_custom_call.1} parent=5 // pred_check
        %p394 = pneg %p393
      $region46: #{tpu_custom_call.1} parent=5 // pred_check_branch
        %396 = sbr.rel (%p394) target = $region48
      $region47: #{tpu_custom_call.1} parent=5 // pred_region
        %s397 = ssub.s32 %s14, 2
        // Predicated region
        $region49: #{tpu_custom_call.1} parent=47 // pred_check
          %p398 = pneg %p132
        $region50: #{tpu_custom_call.1} parent=47 // pred_check_branch
          %400 = sbr.rel (%p398) target = $region52
        $region51: #{tpu_custom_call.1} parent=47 // pred_region
          %s401 = sand.u32 %s117, 1
          %s402 = scalar_lea.sflag [#allocation4], %s401
          %s403 = sand.u32 %s117, 1
          %s404 = smul.addr %s403, 4
          %s405 = scalar_lea.vmem [#allocation5], %s404
          %406 = dma.done %s402, 64
        $region52: #{tpu_custom_call.1} parent=47 // pred_fallthru
          _
      $region48: #{tpu_custom_call.1} parent=5 // pred_fallthru
        _
    $region6: #{tpu_custom_call.1} parent=1 // loop_footer
      %s18 = sadd.s32 1, %s14
    $region7: #{tpu_custom_call.1} parent=1 // loop_footer_branch
      %13 = sbr.rel target = $region3
    $region8: #{tpu_custom_call.1} parent=1 // loop_exit
      _
    %407 = vsyncpa [#allocation3], 1
    %s408 = scalar_lea.sflag [#allocation3], 1
    %409 = vsyncpa %s408, 1
    %410 = vsyncpa [#allocation4], 1
    %s411 = scalar_lea.sflag [#allocation4], 1
    %412 = vsyncpa %s411, 1

// kernel: tpu_custom_call.1
$region0: #{tpu_custom_call.1}
  #allocation0 [shape = 'u32[]', space=smem, size = 0x4, offset = 0x4, fixed_abs, tag = 'smem constant byte address 0x4 - core index']
  #allocation1 [shape = 'u32[144,128]{1,0:T(1,128)}', space=vmem, size = 0x12000, scoped, tag = 'internal scratch']
  %s0 = inlined_call_operand.vmem [shape: f32[16,1], index: 0, kind: input, shape index: {}]
  %s1 = inlined_call_operand.vmem [shape: f32[1,128], index: 1, kind: input, shape index: {}]
  %s2 = inlined_call_operand.hbm [shape: bf16[128,128], index: 2, kind: input, shape index: {}]
  %s3 = inlined_call_operand.vmem [shape: f32[4,128], index: 3, kind: input, shape index: {}]
  %s4 = inlined_call_operand.hbm [shape: bf16[16,128], index: 4, kind: output, shape index: {}]
  %s5 = sld [smem:[#allocation0]]
  $region53: #{tpu_custom_call.1} parent=0
    _
  %s7 = ssub.s32 1, %s5
  %s8 = scalar_select 0, %s7, %s5
  $region1: #{tpu_custom_call.1} parent=0
    #allocation2 [shape = 'u8[32768]{0}', space=vmem, size = 0x8000, scoped, tag = 'input window, operand 2, single buffered']
    #allocation3 [shape = 's32[2]{0}', space=sflag, size = 0x8, scoped, tag = 'scoped memory for tpu_custom_call.1']
    #allocation4 [shape = 's32[2]{0}', space=sflag, size = 0x8, scoped, tag = 'scoped memory for tpu_custom_call.1']
    #allocation5 [shape = 'u8[4096]{0}', space=vmem, size = 0x1000, scoped, tag = 'output window, operand 0']
    %9 = vsyncpa [#allocation3], 0
    %10 = vsyncpa [#allocation4], 0
    %s11 = scalar_lea.sflag [#allocation4], 1
    %12 = vsyncpa %s11, 0
    loop: start=0, step=1, limit=4
    $region2: #{tpu_custom_call.1} parent=1 // loop_pre_header
      _
    $region3: #{tpu_custom_call.1} parent=1 // loop_header
      %s14 = sphi 0, %s18
      %p15 = scmp.ge.s32.totalorder %s14, 4
      %s24 = sphi 0, %s26
      %s27 = sphi 0, %s24
      %s28 = sphi 0, %s27
      %s44 = sphi 0, %s28
      %s48 = sphi 0, %s48
      %s50 = sphi 0, %s48
      %s51 = sphi 0, %s50
      %s65 = sphi 0, %s51
      %s69 = sphi 0, %s69
      %s71 = sphi 0, %s69
      %s72 = sphi 0, %s71
      %s86 = sphi 0, %s72
      %s90 = sphi 0, %s90
      %s92 = sphi 0, %s90
      %s93 = sphi 0, %s92
      %s107 = sphi 0, %s93
      %s113 = sphi 0, %s115
      %s116 = sphi 0, %s113
      %s117 = sphi 0, %s116
      %s133 = sphi 0, %s117
    $region4: #{tpu_custom_call.1} parent=1 // loop_header_branch
      %17 = sbr.rel (%p15) target = $region8
    $region5: #{tpu_custom_call.1} parent=1 // loop_body
      %s19 = ssub.s32 %s14, 1
      %s20 = ssub.s32 %s14, 2
      %s21 = sadd.s32 %s14, 1
      %s22 = ssub.s32 %s14, %s21
      %p23 = scmp.eq.s32.totalorder %s22, 0
      %s25 = sadd.s32 %s24, 1
      %s26 = scalar_select %p23, %s24, %s25
      %p29 = pneg %p23
      %p30 = scmp.eq.s32.totalorder %s14, 1
      %p31 = por %p29, %p30
      %p32 = scmp.ne.s32.totalorder %s24, %s27
      %p33 = scmp.eq.s32.totalorder %s14, 0
      %p34 = por %p32, %p33
      %p35 = scmp.ne.s32.totalorder %s24, %s27
      %p36 = scmp.eq.s32.totalorder %s19, 1
      %p37 = por %p35, %p36
      %p38 = scmp.ne.s32.totalorder %s27, %s28
      %p39 = scmp.eq.s32.totalorder %s19, 0
      %p40 = por %p38, %p39
      %p41 = scmp.ne.s32.totalorder %s27, %s28
      %p42 = scmp.eq.s32.totalorder %s20, 1
      %p43 = por %p41, %p42
      %p45 = scmp.ne.s32.totalorder %s28, %s44
      %p46 = scmp.eq.s32.totalorder %s20, 0
      %p47 = por %p45, %p46
      %s49 = sadd.s32 %s48, 1
      %p52 = scmp.eq.s32.totalorder %s14, 1
      %p53 = scmp.ne.s32.totalorder %s48, %s50
      %p54 = scmp.eq.s32.totalorder %s14, 0
      %p55 = por %p53, %p54
      %p56 = scmp.ne.s32.totalorder %s48, %s50
      %p57 = scmp.eq.s32.totalorder %s19, 1
      %p58 = por %p56, %p57
      %p59 = scmp.ne.s32.totalorder %s50, %s51
      %p60 = scmp.eq.s32.totalorder %s19, 0
      %p61 = por %p59, %p60
      %p62 = scmp.ne.s32.totalorder %s50, %s51
      %p63 = scmp.eq.s32.totalorder %s20, 1
      %p64 = por %p62, %p63
      %p66 = scmp.ne.s32.totalorder %s51, %s65
      %p67 = scmp.eq.s32.totalorder %s20, 0
      %p68 = por %p66, %p67
      %s70 = sadd.s32 %s69, 1
      %p73 = scmp.eq.s32.totalorder %s14, 1
      %p74 = scmp.ne.s32.totalorder %s69, %s71
      %p75 = scmp.eq.s32.totalorder %s14, 0
      %p76 = por %p74, %p75
      %p77 = scmp.ne.s32.totalorder %s69, %s71
      %p78 = scmp.eq.s32.totalorder %s19, 1
      %p79 = por %p77, %p78
      %p80 = scmp.ne.s32.totalorder %s71, %s72
      %p81 = scmp.eq.s32.totalorder %s19, 0
      %p82 = por %p80, %p81
      %p83 = scmp.ne.s32.totalorder %s71, %s72
      %p84 = scmp.eq.s32.totalorder %s20, 1
      %p85 = por %p83, %p84
      %p87 = scmp.ne.s32.totalorder %s72, %s86
      %p88 = scmp.eq.s32.totalorder %s20, 0
      %p89 = por %p87, %p88
      %s91 = sadd.s32 %s90, 1
      %p94 = scmp.eq.s32.totalorder %s14, 1
      %p95 = scmp.ne.s32.totalorder %s90, %s92
      %p96 = scmp.eq.s32.totalorder %s14, 0
      %p97 = por %p95, %p96
      %p98 = scmp.ne.s32.totalorder %s90, %s92
      %p99 = scmp.eq.s32.totalorder %s19, 1
      %p100 = por %p98, %p99
      %p101 = scmp.ne.s32.totalorder %s92, %s93
      %p102 = scmp.eq.s32.totalorder %s19, 0
      %p103 = por %p101, %p102
      %p104 = scmp.ne.s32.totalorder %s92, %s93
      %p105 = scmp.eq.s32.totalorder %s20, 1
      %p106 = por %p104, %p105
      %p108 = scmp.ne.s32.totalorder %s93, %s107
      %p109 = scmp.eq.s32.totalorder %s20, 0
      %p110 = por %p108, %p109
      %s111 = ssub.s32 %s14, %s21
      %p112 = scmp.eq.s32.totalorder %s111, 0
      %s114 = sadd.s32 %s113, 1
      %s115 = scalar_select %p112, %s113, %s114
      %p118 = pneg %p112
      %p119 = scmp.eq.s32.totalorder %s14, 1
      %p120 = por %p118, %p119
      %p121 = scmp.ne.s32.totalorder %s113, %s116
      %p122 = scmp.eq.s32.totalorder %s14, 0
      %p123 = por %p121, %p122
      %p124 = scmp.ne.s32.totalorder %s113, %s116
      %p125 = scmp.eq.s32.totalorder %s19, 1
      %p126 = por %p124, %p125
      %p127 = scmp.ne.s32.totalorder %s116, %s117
      %p128 = scmp.eq.s32.totalorder %s19, 0
      %p129 = por %p127, %p128
      %p130 = scmp.ne.s32.totalorder %s116, %s117
      %p131 = scmp.eq.s32.totalorder %s20, 1
      %p132 = por %p130, %p131
      %p134 = scmp.ne.s32.totalorder %s117, %s133
      %p135 = scmp.eq.s32.totalorder %s20, 0
      %p136 = por %p134, %p135
      %p137 = scmp.le.s32.totalorder 1, %s14
      %p138 = scmp.lt.s32.totalorder %s14, 3
      %p139 = pnand %p137, %p138
      %p140 = pneg %p139
      // Predicated region
      $region9: #{tpu_custom_call.1} parent=5 // pred_check
        _
      $region10: #{tpu_custom_call.1} parent=5 // pred_check_branch
        %142 = sbr.rel (%p139) target = $region12
      $region11: #{tpu_custom_call.1} parent=5 // pred_region
        %s143 = ssub.s32 %s14, 1
        // Predicated region
        $region13: #{tpu_custom_call.1} parent=11 // pred_check
          %p144 = pneg %p61
        $region14: #{tpu_custom_call.1} parent=11 // pred_check_branch
          %146 = sbr.rel (%p144) target = $region16
        $region15: #{tpu_custom_call.1} parent=11 // pred_region
          _
        $region16: #{tpu_custom_call.1} parent=11 // pred_fallthru
          _
        // Predicated region
        $region17: #{tpu_custom_call.1} parent=11 // pred_check
          %p147 = pneg %p82
        $region18: #{tpu_custom_call.1} parent=11 // pred_check_branch
          %149 = sbr.rel (%p147) target = $region20
        $region19: #{tpu_custom_call.1} parent=11 // pred_region
          %s151 = ssub.s32 1024, 1024
          %152 = vsyncadd [#allocation3], %s151
          %s153 = sshll.u32 [#allocation2], 4
          %s154 = int_to_ptr.vmem [resolvable:$true] %s153
          %159 = dma.hbm_to_vmem [thread:$0]  %s2, 1024, %s154, [#allocation3], 64, 64, 4
        $region20: #{tpu_custom_call.1} parent=11 // pred_fallthru
          _
        // Predicated region
        $region21: #{tpu_custom_call.1} parent=11 // pred_check
          %p160 = pneg %p103
        $region22: #{tpu_custom_call.1} parent=11 // pred_check_branch
          %162 = sbr.rel (%p160) target = $region24
        $region23: #{tpu_custom_call.1} parent=11 // pred_region
          _
        $region24: #{tpu_custom_call.1} parent=11 // pred_fallthru
          _
      $region12: #{tpu_custom_call.1} parent=5 // pred_fallthru
        _
      %p163 = scmp.lt.s32.totalorder %s14, 2
      // Predicated region
      $region25: #{tpu_custom_call.1} parent=5 // pred_check
        %p164 = pneg %p163
      $region26: #{tpu_custom_call.1} parent=5 // pred_check_branch
        %166 = sbr.rel (%p164) target = $region28
      $region27: #{tpu_custom_call.1} parent=5 // pred_region
        // Predicated region
        $region29: #{tpu_custom_call.1} parent=27 // pred_check
          %p167 = pneg %p34
        $region30: #{tpu_custom_call.1} parent=27 // pred_check_branch
          %169 = sbr.rel (%p167) target = $region32
        $region31: #{tpu_custom_call.1} parent=27 // pred_region
          %p170 = scmp.lt.s32.totalorder %s14, 1
          %s171 = scalar_select %p170, %s14, 1
          %s172 = smul.addr %s171, 8
          %s173 = scalar_lea.vmem %s0, %s172
        $region32: #{tpu_custom_call.1} parent=27 // pred_fallthru
          _
      $region28: #{tpu_custom_call.1} parent=5 // pred_fallthru
        _
      %p174 = scmp.le.s32.totalorder 1, %s14
      %p175 = scmp.lt.s32.totalorder %s14, 3
      %p176 = pnand %p174, %p175
      %p177 = pneg %p176
      // Predicated region
      $region33: #{tpu_custom_call.1} parent=5 // pred_check
        _
      $region34: #{tpu_custom_call.1} parent=5 // pred_check_branch
        %179 = sbr.rel (%p176) target = $region36
      $region35: #{tpu_custom_call.1} parent=5 // pred_region
        %s180 = ssub.s32 %s14, 1
        // Predicated region
        $region37: #{tpu_custom_call.1} parent=35 // pred_check
          %p181 = pneg %p82
        $region38: #{tpu_custom_call.1} parent=35 // pred_check_branch
          %183 = sbr.rel (%p181) target = $region40
        $region39: #{tpu_custom_call.1} parent=35 // pred_region
          %184 = dma.done [#allocation3], 1024
        $region40: #{tpu_custom_call.1} parent=35 // pred_fallthru
          _
        %p185 = scmp.lt.s32.totalorder %s19, 1
        %s186 = scalar_select %p185, %s19, 1
        %s187 = smul.addr %s186, 8
        %s188 = scalar_lea.vmem %s0, %s187
        %p189 = pneg %p40
        %p190 = pneg %p37
        %p191 = pneg %p61
        %p192 = pneg %p58
        %p193 = pneg %p82
        %p194 = pneg %p79
        %p195 = pneg %p103
        %p196 = pneg %p100
        %p197 = pneg %p129
        %p198 = pneg %p126
        %s199 = sand.u32 %s116, 1
        %s200 = scalar_lea.sflag [#allocation4], %s199
        %s201 = sand.u32 %s116, 1
        %s202 = smul.addr %s201, 4
        %s203 = scalar_lea.vmem [#allocation5], %s202
        %p204 = scmp.lt.s32.totalorder %s19, 1
        %s205 = scalar_select %p204, %s19, 1
        %s206 = smul.addr %s205, 8
        %s207 = scalar_lea.vmem %s0, %s206
        %v209 = vld [vmem:[%s3] sm:$0xf]
        %v210 = vlaneseq
        %v211 = vand.u32 %v210, 127
        %vm212 = vcmp.lt.s32.totalorder %v211, 32
        %v213 = vld [vmem:[%s1] sm:$0x1]
        %v214 = vld [vmem:[#allocation2] sm:$0xf]
        %v215 = vld [vmem:[#allocation2 + $0x4] sm:$0xf]
        %v216 = vld [vmem:[#allocation2 + $0x8] sm:$0xf]
        %v217 = vld [vmem:[#allocation2 + $0xc] sm:$0xf]
        %v218 = vld [vmem:[#allocation2 + $0x10] sm:$0xf]
        %v219 = vld [vmem:[#allocation2 + $0x14] sm:$0xf]
        %v220 = vld [vmem:[#allocation2 + $0x18] sm:$0xf]
        %v221 = vld [vmem:[#allocation2 + $0x1c] sm:$0xf]
        %v222 = vld [vmem:[#allocation2 + $0x20] sm:$0xf]
        %v223 = vld [vmem:[#allocation2 + $0x24] sm:$0xf]
        %v224 = vld [vmem:[#allocation2 + $0x28] sm:$0xf]
        %v225 = vld [vmem:[#allocation2 + $0x2c] sm:$0xf]
        %v226 = vld [vmem:[#allocation2 + $0x30] sm:$0xf]
        %v227 = vld [vmem:[#allocation2 + $0x34] sm:$0xf]
        %v228 = vld [vmem:[#allocation2 + $0x38] sm:$0xf]
        %v229 = vld [vmem:[#allocation2 + $0x3c] sm:$0xf]
        %v230 = vld [vmem:[%s207] sm:$0xff]
        %v231 = vlaneseq
        %v232 = vshrl.u32 %v231, 7
        %v233 = vsub.s32 0, %v232
        %v234 = vrot.slane %v209, %v233
        %236 = vset.pattern.permute.xlu0 0
        %237 = vperm.xlu0 %236, %v230
        %v238 = vpop.permute.xlu0 %237
        %v241 = vlaneseq
        %v242 = vshrl.u32 %v241, 7
        %v243 = vsub.s32 0, %v242
        %v244 = vrot.slane %v213, %v243
        %v246 = vmul.f32 %v238, %v244
        %v247 = vadd.f32 %v234, %v246
        %248 = vadd.xlane.f32.xlu0 %v247
        %v249 = vpop.xlane.xlu0 %248
        %v250 = vmul.f32 %v249, 0.03125
        %v251 = vsub.f32 %v247, %v250
        %v252 = vsel %vm212, 1, 0
        %vm253 = vcmp.eq.s32.totalorder %v252, 1
        %v254 = vsel %vm253, %v251, 0.0
        %v255 = vmul.f32 %v254, %v254
        %256 = vadd.xlane.f32.xlu0 %v255
        %v257 = vpop.xlane.xlu0 %256
        %v258 = vmul.f32 %v257, 0.03125
        %v259 = vadd.f32 %v258, 1e-05
        %v260 = vrsqrt.pop %v259
        %v261 = vmul.f32 %v254, %v260
        %v262 = vlaneseq
        %v263 = vshrl.u32 %v262, 7
        %v264 = vsub.s32 1, %v263
        %v265 = vrot.slane %v209, %v264
        %v266 = vmul.f32 %v261, %v265
        %v267 = vlaneseq
        %v268 = vshrl.u32 %v267, 7
        %v269 = vsub.s32 2, %v268
        %v270 = vrot.slane %v209, %v269
        %v271 = vadd.f32 %v266, %v270
        %v272 = vmin.f32 %v271, 0.0
        %v273 = vmul.f32 %v272, 1.442695
        %v274 = vpow.pop %v273
        %vm275 = vcmp.eq.f32.partialorder %v274, 1.0
        %v276 = vsub.f32 %v274, 1.0
        %v277 = vsel %vm275, %v271, %v276
        %vm278 = vcmp.gt.f32.partialorder %v271, 0.0
        %v279 = vsel %vm278, %v271, %v277
        %v280 = vpack.c.bf16 %v279, %v279
        %v281 = vlaneseq
        %v282 = vshrl.u32 %v281, 7
        %v283 = vsub.s32 3, %v282
        %v284 = vrot.slane %v209, %v283
        %v301 = vunpack.c.l.b16 %v214
        %v302 = vunpack.c.l.b16 %v215
        %v303 = vunpack.c.l.b16 %v216
        %v304 = vunpack.c.l.b16 %v217
        %v305 = vunpack.c.l.b16 %v218
        %v306 = vunpack.c.l.b16 %v219
        %v307 = vunpack.c.l.b16 %v220
        %v308 = vunpack.c.l.b16 %v221
        %v309 = vunpack.c.l.b16 %v222
        %v310 = vunpack.c.l.b16 %v223
        %v311 = vunpack.c.l.b16 %v224
        %v312 = vunpack.c.l.b16 %v225
        %v313 = vunpack.c.l.b16 %v226
        %v314 = vunpack.c.l.b16 %v227
        %v315 = vunpack.c.l.b16 %v228
        %v316 = vunpack.c.l.b16 %v229
        %v317 = vpack.c.b16 %v302, %v301
        %v318 = vpack.c.b16 %v304, %v303
        %v319 = vpack.c.b16 %v306, %v305
        %v320 = vpack.c.b16 %v308, %v307
        %v321 = vpack.c.b16 %v310, %v309
        %v322 = vpack.c.b16 %v312, %v311
        %v323 = vpack.c.b16 %v314, %v313
        %v324 = vpack.c.b16 %v316, %v315
        %333 = vmatprep.subr.bf16.mxu0 0
        %334 = vmatpush1.bf16.msra.mxu0 %v317
        %335 = vmatprep.subr.bf16.mxu0 0
        %336 = vmatpush1.bf16.msra.mxu0 %v318
        %337 = vmatprep.subr.bf16.mxu0 0
        %338 = vmatpush1.bf16.msra.mxu0 %v319
        %339 = vmatprep.subr.bf16.mxu0 0
        %340 = vmatpush1.bf16.msra.mxu0 %v320
        %341 = vmatprep.subr.bf16.mxu0 0
        %342 = vmatpush1.bf16.msra.mxu0 %v321
        %343 = vmatprep.subr.bf16.mxu0 0
        %344 = vmatpush1.bf16.msra.mxu0 %v322
        %345 = vmatprep.subr.bf16.mxu0 0
        %346 = vmatpush1.bf16.msra.mxu0 %v323
        %347 = vmatprep.subr.bf16.mxu0 0
        %348 = vmatpush1.bf16.msra.mxu0 %v324
        %349 = vmatprep.subr.bf16.mxu0 0
        %350 = vmatpush1.bf16.msra.mxu0 0
        %351 = vmatprep.subr.bf16.mxu0 0
        %352 = vmatpush1.bf16.msra.mxu0 0
        %353 = vmatprep.subr.bf16.mxu0 0
        %354 = vmatpush1.bf16.msra.mxu0 0
        %355 = vmatprep.subr.bf16.mxu0 0
        %356 = vmatpush1.bf16.msra.mxu0 0
        %357 = vmatprep.subr.bf16.mxu0 0
        %358 = vmatpush1.bf16.msra.mxu0 0
        %359 = vmatprep.subr.bf16.mxu0 0
        %360 = vmatpush1.bf16.msra.mxu0 0
        %361 = vmatprep.subr.bf16.mxu0 0
        %362 = vmatpush1.bf16.msra.mxu0 0
        %363 = vmatprep.subr.bf16.mxu0 0
        %364 = vmatpush1.bf16.msra.mxu0 0
        %365 = vmatprep.mubr.bf16.mxu0 0
        %366 = vmatmul.mubr.bf16.gmra.mrb[0].mxu0 %v280
        %v367 = vpop.f32.mrb[0].mxu0
        %v368 = vadd.f32 %v284, %v367
        %v369 = vpop.f32.mrb[0].mxu0
        %v370 = vpop.f32.mrb[0].mxu0
        %v371 = vpop.f32.mrb[0].mxu0
        %372 = vdwg.mxu0
        %v373 = vpack.c.bf16 %v368, %v368
        %374 = vst [vmem:[%s203] sm:$0xf] %v373
        %s375 = sand.u32 %s116, 1
        %s376 = scalar_lea.sflag [#allocation4], %s375
        %s377 = sand.u32 %s116, 1
        %s378 = smul.addr %s377, 4
        %s379 = scalar_lea.vmem [#allocation5], %s378
        // Predicated region
        $region41: #{tpu_custom_call.1} parent=35 // pred_check
          %p380 = pneg %p126
        $region42: #{tpu_custom_call.1} parent=35 // pred_check_branch
          %382 = sbr.rel (%p380) target = $region44
        $region43: #{tpu_custom_call.1} parent=35 // pred_region
          %s384 = ssub.s32 64, 64
          %385 = vsyncadd %s376, %s384
          %s386 = smul.addr %s19, 64
          %s387 = scalar_lea.hbm %s4, %s386
          %s389 = sshll.u32 %s379, 4
          %s390 = int_to_ptr.vmem [resolvable:$true] %s389
          %392 = dma.vmem_to_hbm [thread:$0]  %s390, 64, %s387, %s376
        $region44: #{tpu_custom_call.1} parent=35 // pred_fallthru
          _
      $region36: #{tpu_custom_call.1} parent=5 // pred_fallthru
        _
      %p393 = scmp.le.s32.totalorder 2, %s14
      // Predicated region
      $region45: #{tpu_custom_call.1} parent=5 // pred_check
        %p394 = pneg %p393
      $region46: #{tpu_custom_call.1} parent=5 // pred_check_branch
        %396 = sbr.rel (%p394) target = $region48
      $region47: #{tpu_custom_call.1} parent=5 // pred_region
        %s397 = ssub.s32 %s14, 2
        // Predicated region
        $region49: #{tpu_custom_call.1} parent=47 // pred_check
          %p398 = pneg %p132
        $region50: #{tpu_custom_call.1} parent=47 // pred_check_branch
          %400 = sbr.rel (%p398) target = $region52
        $region51: #{tpu_custom_call.1} parent=47 // pred_region
          %s401 = sand.u32 %s117, 1
          %s402 = scalar_lea.sflag [#allocation4], %s401
          %s403 = sand.u32 %s117, 1
          %s404 = smul.addr %s403, 4
          %s405 = scalar_lea.vmem [#allocation5], %s404
          %406 = dma.done %s402, 64
        $region52: #{tpu_custom_call.1} parent=47 // pred_fallthru
          _
      $region48: #{tpu_custom_call.1} parent=5 // pred_fallthru
        _
    $region6: #{tpu_custom_call.1} parent=1 // loop_footer
      %s18 = sadd.s32 1, %s14
    $region7: #{tpu_custom_call.1} parent=1 // loop_footer_branch
      %13 = sbr.rel target = $region3
    $region8: #{tpu_custom_call.1} parent=1 // loop_exit
      _
    %407 = vsyncpa [#allocation3], 1
    %s408 = scalar_lea.sflag [#allocation3], 1
    %409 = vsyncpa %s408, 1
    %410 = vsyncpa [#allocation4], 1
    %s411 = scalar_lea.sflag [#allocation4], 1
    %412 = vsyncpa %s411, 1

</llo_original>
